<compile_context>
chip_gen: v7x
topology: tpu7x:2x2x1
jax: 0.10.0
libtpu: 0.0.40
codegen_flags: <defaults>
</compile_context>

<pallas_src>
import functools

import jax
import jax.numpy as jnp
import numpy as np
from jax import lax
from jax.experimental import pallas as pl
from jax.experimental.pallas import tpu as pltpu


def _round_up(x, m):
    return -(-x // m) * m


def _sigmoid_via_tanh(x):
    # sigmoid(x) = 0.5 + 0.5 * tanh(x / 2): one EUP transcendental per element
    # instead of exp + reciprocal (relieves the single EUP VLIW slot).
    return 0.5 + 0.5 * jnp.tanh(0.5 * x)


def _lstm_recurrence_kernel(g_ref, whh_ref, h_out_ref, h_sc, c_sc, *,
                            hidden_pad, steps_per_block, seq_len, unroll):
    """One grid step = `steps_per_block` LSTM timesteps for one batch block.

    g_ref:     (Tt, Bb, 4*Hp) precomputed input projection (x @ W_ih^T + bias),
               gate columns in [i, f, o, g] order, each gate lane-padded to Hp.
    whh_ref:   (Hp, 4*Hp) recurrent weights, transposed, same layout (resident,
               loop-invariant).
    h_out_ref: (Bb, Hp) final hidden state for this batch block.
    h_sc/c_sc: (Bb, Hp) f32 recurrent state, resident across time blocks.
    """
    tb = pl.program_id(1)
    Hp = hidden_pad

    @pl.when(tb == 0)
    def _init():
        h_sc[...] = jnp.zeros_like(h_sc)
        c_sc[...] = jnp.zeros_like(c_sc)

    whh = whh_ref[...]  # loaded once per grid step, reused by every inner step
    mask_tail = (seq_len % steps_per_block) != 0  # static Python bool

    def step(i, carry):
        h, c = carry
        gates = g_ref[i].astype(jnp.float32) + jnp.dot(
            h.astype(whh.dtype), whh, preferred_element_type=jnp.float32)
        sig = _sigmoid_via_tanh(gates[:, :3 * Hp])   # contiguous [i | f | o]
        g_g = jnp.tanh(gates[:, 3 * Hp:])            # trailing  [g]
        i_g = sig[:, :Hp]                            # whole-vreg slices
        f_g = sig[:, Hp:2 * Hp]
        o_g = sig[:, 2 * Hp:]
        c_new = f_g * c + i_g * g_g
        h_new = o_g * jnp.tanh(c_new)
        if mask_tail:
            valid = (tb * steps_per_block + i) < seq_len
            h_new = jnp.where(valid, h_new, h)
            c_new = jnp.where(valid, c_new, c)
        return h_new, c_new

    h_f, c_f = lax.fori_loop(0, steps_per_block, step,
                             (h_sc[...], c_sc[...]), unroll=unroll)
    h_sc[...] = h_f
    c_sc[...] = c_f

    @pl.when(tb == pl.num_programs(1) - 1)
    def _finalize():
        h_out_ref[...] = h_f.astype(h_out_ref.dtype)


def _vmem_capacity_bytes():
    try:
        return int(pltpu.get_tpu_info().vmem_capacity_bytes)
    except Exception:
        return 64 << 20  # conservative: v7x per-TensorCore physical VMEM


def _resident_block_spec(shape, index_map):
    """Loop-invariant operand: single-buffer it when the API supports it."""
    try:
        return pl.BlockSpec(shape, index_map, pipeline_mode=pl.Buffered(1))
    except TypeError:  # constructor-level feature check only
        return pl.BlockSpec(shape, index_map)


def _run_recurrence(g_tm, whh_t, *, hidden_pad, batch_blocks, seq_len,
                    max_time_block=256):
    Tp, Bp, G4 = g_tm.shape
    Hp = hidden_pad
    Bb = Bp // batch_blocks
    g_item = jnp.dtype(g_tm.dtype).itemsize
    w_item = jnp.dtype(whh_t.dtype).itemsize

    # Per-generation VMEM budget: headroom on v7x (64 MiB physical per TC),
    # up to ~100 MiB on v5e/v6e (128 MiB physical).
    budget = max(32 << 20, min(_vmem_capacity_bytes() - (16 << 20), 100 << 20))

    fixed = (Hp * G4 * w_item          # resident W_hh^T (single-buffered)
             + 2 * Bb * Hp * 4         # h/c f32 scratch
             + 2 * Bb * Hp * 4)        # output block
    per_step = 2 * Bb * G4 * g_item    # double-buffered G per timestep
    tt_budget = max(1, (budget - fixed - (4 << 20)) // per_step)
    Tt = int(max(1, min(tt_budget, seq_len, max_time_block)))

    n_tblocks = -(-seq_len // Tt)      # ceil-div; tail timesteps are masked
    T_pad = n_tblocks * Tt
    if T_pad != Tp:
        g_tm = jnp.pad(g_tm, ((0, T_pad - Tp), (0, 0), (0, 0)))

    # Full unroll for narrow gate rows (LLO visibility); bounded unroll when
    # the gate row is wide to avoid vreg pressure / spills.
    unroll = Tt if G4 < 2048 else min(Tt, 8)

    est = 2 * Tt * Bb * G4 * g_item + fixed
    vmem_limit = int(min(budget, max(est + (4 << 20), 32 << 20)))

    kernel = functools.partial(_lstm_recurrence_kernel, hidden_pad=Hp,
                               steps_per_block=Tt, seq_len=seq_len,
                               unroll=unroll)

    return pl.pallas_call(
        kernel,
        out_shape=jax.ShapeDtypeStruct((Bp, Hp), jnp.float32),
        grid_spec=pltpu.PrefetchScalarGridSpec(
            num_scalar_prefetch=0,
            grid=(batch_blocks, n_tblocks),
            in_specs=[
                pl.BlockSpec((Tt, Bb, G4), lambda bb, tb: (tb, bb, 0)),  # G
                _resident_block_spec((Hp, G4), lambda bb, tb: (0, 0)),   # W_hh^T
            ],
            out_specs=pl.BlockSpec((Bb, Hp), lambda bb, tb: (bb, 0)),
            scratch_shapes=[
                pltpu.VMEM((Bb, Hp), jnp.float32),   # h state
                pltpu.VMEM((Bb, Hp), jnp.float32),   # c state
            ],
        ),
        compiler_params=pltpu.CompilerParams(
            # batch blocks are independent (megacore); time is sequential
            dimension_semantics=("parallel", "arbitrary"),
            vmem_limit_bytes=vmem_limit,
        ),
    )(g_tm, whh_t)


def lstm_model_forward(inputs, params, *, compute_dtype=jnp.bfloat16,
                       max_time_block=256):
    """inputs: (B, T, I) batch_first (cast to f32 like torch `.float()`).

    compute_dtype: dtype of the streamed gate tensor G and the resident
    W_hh^T (bf16 is MXU-native on v5e/v6e/v7x and halves DMA/VMEM); all
    accumulation and the h/c state stay f32.  Use jnp.float32 for exact
    parity with the f32 reference.
    """
    w_ih, w_hh = params["w_ih"], params["w_hh"]
    b_ih, b_hh = params["b_ih"], params["b_hh"]
    w_dense, b_dense = params["w_dense"], params["b_dense"]

    x = inputs.astype(jnp.float32)
    B, T, I = x.shape
    H = w_hh.shape[1]                  # w_hh: (4H, H) PyTorch layout
    if T == 0:
        raise ValueError("sequence length must be >= 1")

    # Lane-align gates: pad each gate block to Hp = round_up(H, 128) and
    # reorder PyTorch rows [i, f, g, o] -> [i, f, o, g] so sigmoid gets one
    # contiguous (B, 3*Hp) slice and tanh the trailing (B, Hp) slice.
    Hp = _round_up(H, 128)

    def reorder_pad_rows(w):
        i_, f_, g_, o_ = w[:H], w[H:2 * H], w[2 * H:3 * H], w[3 * H:]
        pad = [(0, Hp - H)] + [(0, 0)] * (w.ndim - 1)
        return jnp.concatenate(
            [jnp.pad(blk.astype(jnp.float32), pad) for blk in (i_, f_, o_, g_)],
            axis=0)

    w_ih_r = reorder_pad_rows(w_ih)                        # (4Hp, I)
    w_hh_r = reorder_pad_rows(w_hh)                        # (4Hp, H)
    w_hh_r = jnp.pad(w_hh_r, ((0, 0), (0, Hp - H)))        # (4Hp, Hp)
    b_r = reorder_pad_rows(b_ih + b_hh)                    # (4Hp,)

    # Hoisted time-parallel input projection, produced time-major directly
    # (transpose the small x instead of the 4H-wide G).
    x_tm = jnp.transpose(x, (1, 0, 2))                     # (T, B, I)
    g_tm = (x_tm.reshape(T * B, I) @ w_ih_r.T + b_r).reshape(T, B, 4 * Hp)

    # Pad batch to a sublane multiple; split into 2 blocks when B > 8 so v7x
    # can run one block per TensorCore (a cheap serial loop on v5e/v6e).
    if B > 8:
        Bp = _round_up(B, 16)
        batch_blocks = 2
    else:
        Bp = 8
        batch_blocks = 1
    if Bp != B:
        g_tm = jnp.pad(g_tm, ((0, 0), (0, Bp - B), (0, 0)))

    g_tm = g_tm.astype(compute_dtype)
    whh_t = jnp.transpose(w_hh_r).astype(compute_dtype)    # (Hp, 4Hp)

    h_last = _run_recurrence(g_tm, whh_t, hidden_pad=Hp,
                             batch_blocks=batch_blocks, seq_len=T,
                             max_time_block=max_time_block)
    h_last = h_last[:B, :H]

    # TODO(synk): Dropout is identity in eval mode; training-mode dropout
    # (scaled Bernoulli mask) is not applied here.
    # Final Linear on the last hidden state -> plain XLA (tiny matmul).
    return h_last @ w_dense.T.astype(jnp.float32) + b_dense.astype(jnp.float32)


def _reference_forward(inputs, params):
    """Pure-JAX reference matching torch semantics (eval-mode dropout)."""
    x = inputs.astype(jnp.float32)
    B, T, I = x.shape
    w_ih, w_hh = params["w_ih"], params["w_hh"]
    b = params["b_ih"] + params["b_hh"]
    H = w_hh.shape[1]
    h = jnp.zeros((B, H), jnp.float32)
    c = jnp.zeros((B, H), jnp.float32)
    for t in range(T):
        g = x[:, t, :] @ w_ih.T + h @ w_hh.T + b
        i_g = jax.nn.sigmoid(g[:, 0 * H:1 * H])
        f_g = jax.nn.sigmoid(g[:, 1 * H:2 * H])
        g_g = jnp.tanh(g[:, 2 * H:3 * H])
        o_g = jax.nn.sigmoid(g[:, 3 * H:4 * H])
        c = f_g * c + i_g * g_g
        h = o_g * jnp.tanh(c)
    return h @ params["w_dense"].T + params["b_dense"]


def init_params(key, input_size, hidden_size, out_size):
    """Deterministic init mirroring PyTorch shapes (uniform +-1/sqrt(H))."""
    ks = jax.random.split(key, 6)
    s = 1.0 / np.sqrt(hidden_size)
    u = lambda k, shape: jax.random.uniform(k, shape, jnp.float32, -s, s)
    return {
        "w_ih": u(ks[0], (4 * hidden_size, input_size)),
        "w_hh": u(ks[1], (4 * hidden_size, hidden_size)),
        "b_ih": u(ks[2], (4 * hidden_size,)),
        "b_hh": u(ks[3], (4 * hidden_size,)),
        "w_dense": u(ks[4], (out_size, hidden_size)),
        "b_dense": u(ks[5], (out_size,)),
    }


if __name__ == "__main__":
    B, T, I, H, O = 2, 8, 16, 32, 4
    key = jax.random.PRNGKey(0)
    k_in, k_par = jax.random.split(key)
    inputs = jax.random.normal(k_in, (B, T, I), jnp.float32)
    params = init_params(k_par, I, H, O)

    ref = _reference_forward(inputs, params)

    # Exact-parity mode (f32 W_hh^T + f32 streamed G).
    out_f32 = jax.block_until_ready(
        lstm_model_forward(inputs, params, compute_dtype=jnp.float32))
    assert out_f32.shape == (B, O)
    assert np.allclose(np.asarray(out_f32), np.asarray(ref),
                       atol=1e-4, rtol=1e-4)

    # Default fast path (bf16 W_hh^T + bf16 streamed G, f32 accumulation).
    out_bf16 = jax.block_until_ready(lstm_model_forward(inputs, params))
    assert out_bf16.shape == (B, O)
    assert np.allclose(np.asarray(out_bf16), np.asarray(ref),
                       atol=1e-1, rtol=1e-1)

    print("KERNEL_OK")
</pallas_src>

<mosaic_0001>
module attributes {stable_mosaic.version = 11 : i64} {
  func.func @_lstm_recurrence_kernel(%arg0: i32, %arg1: i32, %arg2: memref<8x8x512xf32, #tpu.memory_space<vmem>>, %arg3: memref<128x512xf32, #tpu.memory_space<vmem>>, %arg4: memref<8x128xf32, #tpu.memory_space<vmem>>, %arg5: memref<8x128xf32, #tpu.memory_space<vmem>>, %arg6: memref<8x128xf32, #tpu.memory_space<vmem>>) attributes {dimension_semantics = [#tpu.dimension_semantics<parallel>, #tpu.dimension_semantics<arbitrary>], iteration_bounds = array<i64: 1, 1>, scalar_prefetch = 0 : i64, scratch_operands = 2 : i64, tpu.core_type = #tpu.core_type<tc>, window_params = [{transform_indices = @transform_0, window_bounds = array<i64: 8, 8, 512>}, {pipeline_mode = #tpu.pipeline_mode<synchronous>, transform_indices = @transform_1, window_bounds = array<i64: 128, 512>}, {transform_indices = @transform_2, window_bounds = array<i64: 8, 128>}]} {
    %c0_i32 = arith.constant 0 : i32
    %0 = arith.cmpi eq, %arg1, %c0_i32 : i32
    %1 = arith.extui %0 : i1 to i32
    %c0_i32_0 = arith.constant 0 : i32
    %2 = arith.cmpi ne, %1, %c0_i32_0 : i32
    scf.if %2 {
      %cst_60 = arith.constant 0.000000e+00 : f32
      %195 = vector.broadcast %cst_60 : f32 to vector<8x128xf32>
      %c0_61 = arith.constant 0 : index
      %c0_62 = arith.constant 0 : index
      %196 = vector.load %arg5[%c0_61, %c0_62] : memref<8x128xf32, #tpu.memory_space<vmem>>, vector<8x128xf32>
      tpu.vector_store %arg5[%c0_61, %c0_62], %195 {strides = array<i32>} : memref<8x128xf32, #tpu.memory_space<vmem>>, vector<8x128xf32>,
      %cst_63 = arith.constant 0.000000e+00 : f32
      %197 = vector.broadcast %cst_63 : f32 to vector<8x128xf32>
      %c0_64 = arith.constant 0 : index
      %c0_65 = arith.constant 0 : index
      %198 = vector.load %arg6[%c0_64, %c0_65] : memref<8x128xf32, #tpu.memory_space<vmem>>, vector<8x128xf32>
      tpu.vector_store %arg6[%c0_64, %c0_65], %197 {strides = array<i32>} : memref<8x128xf32, #tpu.memory_space<vmem>>, vector<8x128xf32>,
    } else {
    }
    %c0 = arith.constant 0 : index
    %c0_1 = arith.constant 0 : index
    %3 = vector.load %arg3[%c0, %c0_1] : memref<128x512xf32, #tpu.memory_space<vmem>>, vector<128x512xf32>
    %c0_2 = arith.constant 0 : index
    %c0_3 = arith.constant 0 : index
    %4 = vector.load %arg5[%c0_2, %c0_3] : memref<8x128xf32, #tpu.memory_space<vmem>>, vector<8x128xf32>
    %c0_4 = arith.constant 0 : index
    %c0_5 = arith.constant 0 : index
    %5 = vector.load %arg6[%c0_4, %c0_5] : memref<8x128xf32, #tpu.memory_space<vmem>>, vector<8x128xf32>
    %c0_i32_6 = arith.constant 0 : i32
    %6 = arith.index_cast %c0_i32_6 : i32 to index
    %c0_7 = arith.constant 0 : index
    %c0_8 = arith.constant 0 : index
    %7 = vector.load %arg2[%6, %c0_7, %c0_8] : memref<8x8x512xf32, #tpu.memory_space<vmem>>, vector<1x8x512xf32>
    %8 = vector.shape_cast %7 : vector<1x8x512xf32> to vector<8x512xf32>
    %cst = arith.constant dense<0.000000e+00> : vector<8x512xf32>
    %9 = tpu.matmul %4, %3, %cst {dimension_numbers = #tpu.dot_dimension_numbers<[1], [0], [0], [1], [0, 0, 1, 1], [], []>} : vector<8x128xf32>, vector<128x512xf32>, vector<8x512xf32> -> vector<8x512xf32>
    %10 = arith.addf %8, %9 : vector<8x512xf32>
    %11 = vector.extract_strided_slice %10 {offsets = [0, 0], sizes = [8, 384], strides = [1, 1]} : vector<8x512xf32> to vector<8x384xf32>
    %cst_9 = arith.constant 5.000000e-01 : f32
    %12 = vector.broadcast %cst_9 : f32 to vector<8x384xf32>
    %13 = arith.mulf %12, %11 : vector<8x384xf32>
    %14 = math.tanh %13 : vector<8x384xf32>
    %cst_10 = arith.constant 5.000000e-01 : f32
    %15 = vector.broadcast %cst_10 : f32 to vector<8x384xf32>
    %16 = arith.mulf %15, %14 : vector<8x384xf32>
    %cst_11 = arith.constant 5.000000e-01 : f32
    %17 = vector.broadcast %cst_11 : f32 to vector<8x384xf32>
    %18 = arith.addf %17, %16 : vector<8x384xf32>
    %19 = vector.extract_strided_slice %10 {offsets = [0, 384], sizes = [8, 128], strides = [1, 1]} : vector<8x512xf32> to vector<8x128xf32>
    %20 = math.tanh %19 : vector<8x128xf32>
    %21 = vector.extract_strided_slice %18 {offsets = [0, 0], sizes = [8, 128], strides = [1, 1]} : vector<8x384xf32> to vector<8x128xf32>
    %22 = vector.extract_strided_slice %18 {offsets = [0, 128], sizes = [8, 128], strides = [1, 1]} : vector<8x384xf32> to vector<8x128xf32>
    %23 = vector.extract_strided_slice %18 {offsets = [0, 256], sizes = [8, 128], strides = [1, 1]} : vector<8x384xf32> to vector<8x128xf32>
    %24 = arith.mulf %22, %5 : vector<8x128xf32>
    %25 = arith.mulf %21, %20 : vector<8x128xf32>
    %26 = arith.addf %24, %25 : vector<8x128xf32>
    %27 = math.tanh %26 : vector<8x128xf32>
    %28 = arith.mulf %23, %27 : vector<8x128xf32>
    %c1_i32 = arith.constant 1 : i32
    %29 = arith.index_cast %c1_i32 : i32 to index
    %c0_12 = arith.constant 0 : index
    %c0_13 = arith.constant 0 : index
    %30 = vector.load %arg2[%29, %c0_12, %c0_13] : memref<8x8x512xf32, #tpu.memory_space<vmem>>, vector<1x8x512xf32>
    %31 = vector.shape_cast %30 : vector<1x8x512xf32> to vector<8x512xf32>
    %cst_14 = arith.constant dense<0.000000e+00> : vector<8x512xf32>
    %32 = tpu.matmul %28, %3, %cst_14 {dimension_numbers = #tpu.dot_dimension_numbers<[1], [0], [0], [1], [0, 0, 1, 1], [], []>} : vector<8x128xf32>, vector<128x512xf32>, vector<8x512xf32> -> vector<8x512xf32>
    %33 = arith.addf %31, %32 : vector<8x512xf32>
    %34 = vector.extract_strided_slice %33 {offsets = [0, 0], sizes = [8, 384], strides = [1, 1]} : vector<8x512xf32> to vector<8x384xf32>
    %cst_15 = arith.constant 5.000000e-01 : f32
    %35 = vector.broadcast %cst_15 : f32 to vector<8x384xf32>
    %36 = arith.mulf %35, %34 : vector<8x384xf32>
    %37 = math.tanh %36 : vector<8x384xf32>
    %cst_16 = arith.constant 5.000000e-01 : f32
    %38 = vector.broadcast %cst_16 : f32 to vector<8x384xf32>
    %39 = arith.mulf %38, %37 : vector<8x384xf32>
    %cst_17 = arith.constant 5.000000e-01 : f32
    %40 = vector.broadcast %cst_17 : f32 to vector<8x384xf32>
    %41 = arith.addf %40, %39 : vector<8x384xf32>
    %42 = vector.extract_strided_slice %33 {offsets = [0, 384], sizes = [8, 128], strides = [1, 1]} : vector<8x512xf32> to vector<8x128xf32>
    %43 = math.tanh %42 : vector<8x128xf32>
    %44 = vector.extract_strided_slice %41 {offsets = [0, 0], sizes = [8, 128], strides = [1, 1]} : vector<8x384xf32> to vector<8x128xf32>
    %45 = vector.extract_strided_slice %41 {offsets = [0, 128], sizes = [8, 128], strides = [1, 1]} : vector<8x384xf32> to vector<8x128xf32>
    %46 = vector.extract_strided_slice %41 {offsets = [0, 256], sizes = [8, 128], strides = [1, 1]} : vector<8x384xf32> to vector<8x128xf32>
    %47 = arith.mulf %45, %26 : vector<8x128xf32>
    %48 = arith.mulf %44, %43 : vector<8x128xf32>
    %49 = arith.addf %47, %48 : vector<8x128xf32>
    %50 = math.tanh %49 : vector<8x128xf32>
    %51 = arith.mulf %46, %50 : vector<8x128xf32>
    %c2_i32 = arith.constant 2 : i32
    %52 = arith.index_cast %c2_i32 : i32 to index
    %c0_18 = arith.constant 0 : index
    %c0_19 = arith.constant 0 : index
    %53 = vector.load %arg2[%52, %c0_18, %c0_19] : memref<8x8x512xf32, #tpu.memory_space<vmem>>, vector<1x8x512xf32>
    %54 = vector.shape_cast %53 : vector<1x8x512xf32> to vector<8x512xf32>
    %cst_20 = arith.constant dense<0.000000e+00> : vector<8x512xf32>
    %55 = tpu.matmul %51, %3, %cst_20 {dimension_numbers = #tpu.dot_dimension_numbers<[1], [0], [0], [1], [0, 0, 1, 1], [], []>} : vector<8x128xf32>, vector<128x512xf32>, vector<8x512xf32> -> vector<8x512xf32>
    %56 = arith.addf %54, %55 : vector<8x512xf32>
    %57 = vector.extract_strided_slice %56 {offsets = [0, 0], sizes = [8, 384], strides = [1, 1]} : vector<8x512xf32> to vector<8x384xf32>
    %cst_21 = arith.constant 5.000000e-01 : f32
    %58 = vector.broadcast %cst_21 : f32 to vector<8x384xf32>
    %59 = arith.mulf %58, %57 : vector<8x384xf32>
    %60 = math.tanh %59 : vector<8x384xf32>
    %cst_22 = arith.constant 5.000000e-01 : f32
    %61 = vector.broadcast %cst_22 : f32 to vector<8x384xf32>
    %62 = arith.mulf %61, %60 : vector<8x384xf32>
    %cst_23 = arith.constant 5.000000e-01 : f32
    %63 = vector.broadcast %cst_23 : f32 to vector<8x384xf32>
    %64 = arith.addf %63, %62 : vector<8x384xf32>
    %65 = vector.extract_strided_slice %56 {offsets = [0, 384], sizes = [8, 128], strides = [1, 1]} : vector<8x512xf32> to vector<8x128xf32>
    %66 = math.tanh %65 : vector<8x128xf32>
    %67 = vector.extract_strided_slice %64 {offsets = [0, 0], sizes = [8, 128], strides = [1, 1]} : vector<8x384xf32> to vector<8x128xf32>
    %68 = vector.extract_strided_slice %64 {offsets = [0, 128], sizes = [8, 128], strides = [1, 1]} : vector<8x384xf32> to vector<8x128xf32>
    %69 = vector.extract_strided_slice %64 {offsets = [0, 256], sizes = [8, 128], strides = [1, 1]} : vector<8x384xf32> to vector<8x128xf32>
    %70 = arith.mulf %68, %49 : vector<8x128xf32>
    %71 = arith.mulf %67, %66 : vector<8x128xf32>
    %72 = arith.addf %70, %71 : vector<8x128xf32>
    %73 = math.tanh %72 : vector<8x128xf32>
    %74 = arith.mulf %69, %73 : vector<8x128xf32>
    %c3_i32 = arith.constant 3 : i32
    %75 = arith.index_cast %c3_i32 : i32 to index
    %c0_24 = arith.constant 0 : index
    %c0_25 = arith.constant 0 : index
    %76 = vector.load %arg2[%75, %c0_24, %c0_25] : memref<8x8x512xf32, #tpu.memory_space<vmem>>, vector<1x8x512xf32>
    %77 = vector.shape_cast %76 : vector<1x8x512xf32> to vector<8x512xf32>
    %cst_26 = arith.constant dense<0.000000e+00> : vector<8x512xf32>
    %78 = tpu.matmul %74, %3, %cst_26 {dimension_numbers = #tpu.dot_dimension_numbers<[1], [0], [0], [1], [0, 0, 1, 1], [], []>} : vector<8x128xf32>, vector<128x512xf32>, vector<8x512xf32> -> vector<8x512xf32>
    %79 = arith.addf %77, %78 : vector<8x512xf32>
    %80 = vector.extract_strided_slice %79 {offsets = [0, 0], sizes = [8, 384], strides = [1, 1]} : vector<8x512xf32> to vector<8x384xf32>
    %cst_27 = arith.constant 5.000000e-01 : f32
    %81 = vector.broadcast %cst_27 : f32 to vector<8x384xf32>
    %82 = arith.mulf %81, %80 : vector<8x384xf32>
    %83 = math.tanh %82 : vector<8x384xf32>
    %cst_28 = arith.constant 5.000000e-01 : f32
    %84 = vector.broadcast %cst_28 : f32 to vector<8x384xf32>
    %85 = arith.mulf %84, %83 : vector<8x384xf32>
    %cst_29 = arith.constant 5.000000e-01 : f32
    %86 = vector.broadcast %cst_29 : f32 to vector<8x384xf32>
    %87 = arith.addf %86, %85 : vector<8x384xf32>
    %88 = vector.extract_strided_slice %79 {offsets = [0, 384], sizes = [8, 128], strides = [1, 1]} : vector<8x512xf32> to vector<8x128xf32>
    %89 = math.tanh %88 : vector<8x128xf32>
    %90 = vector.extract_strided_slice %87 {offsets = [0, 0], sizes = [8, 128], strides = [1, 1]} : vector<8x384xf32> to vector<8x128xf32>
    %91 = vector.extract_strided_slice %87 {offsets = [0, 128], sizes = [8, 128], strides = [1, 1]} : vector<8x384xf32> to vector<8x128xf32>
    %92 = vector.extract_strided_slice %87 {offsets = [0, 256], sizes = [8, 128], strides = [1, 1]} : vector<8x384xf32> to vector<8x128xf32>
    %93 = arith.mulf %91, %72 : vector<8x128xf32>
    %94 = arith.mulf %90, %89 : vector<8x128xf32>
    %95 = arith.addf %93, %94 : vector<8x128xf32>
    %96 = math.tanh %95 : vector<8x128xf32>
    %97 = arith.mulf %92, %96 : vector<8x128xf32>
    %c4_i32 = arith.constant 4 : i32
    %98 = arith.index_cast %c4_i32 : i32 to index
    %c0_30 = arith.constant 0 : index
    %c0_31 = arith.constant 0 : index
    %99 = vector.load %arg2[%98, %c0_30, %c0_31] : memref<8x8x512xf32, #tpu.memory_space<vmem>>, vector<1x8x512xf32>
    %100 = vector.shape_cast %99 : vector<1x8x512xf32> to vector<8x512xf32>
    %cst_32 = arith.constant dense<0.000000e+00> : vector<8x512xf32>
    %101 = tpu.matmul %97, %3, %cst_32 {dimension_numbers = #tpu.dot_dimension_numbers<[1], [0], [0], [1], [0, 0, 1, 1], [], []>} : vector<8x128xf32>, vector<128x512xf32>, vector<8x512xf32> -> vector<8x512xf32>
    %102 = arith.addf %100, %101 : vector<8x512xf32>
    %103 = vector.extract_strided_slice %102 {offsets = [0, 0], sizes = [8, 384], strides = [1, 1]} : vector<8x512xf32> to vector<8x384xf32>
    %cst_33 = arith.constant 5.000000e-01 : f32
    %104 = vector.broadcast %cst_33 : f32 to vector<8x384xf32>
    %105 = arith.mulf %104, %103 : vector<8x384xf32>
    %106 = math.tanh %105 : vector<8x384xf32>
    %cst_34 = arith.constant 5.000000e-01 : f32
    %107 = vector.broadcast %cst_34 : f32 to vector<8x384xf32>
    %108 = arith.mulf %107, %106 : vector<8x384xf32>
    %cst_35 = arith.constant 5.000000e-01 : f32
    %109 = vector.broadcast %cst_35 : f32 to vector<8x384xf32>
    %110 = arith.addf %109, %108 : vector<8x384xf32>
    %111 = vector.extract_strided_slice %102 {offsets = [0, 384], sizes = [8, 128], strides = [1, 1]} : vector<8x512xf32> to vector<8x128xf32>
    %112 = math.tanh %111 : vector<8x128xf32>
    %113 = vector.extract_strided_slice %110 {offsets = [0, 0], sizes = [8, 128], strides = [1, 1]} : vector<8x384xf32> to vector<8x128xf32>
    %114 = vector.extract_strided_slice %110 {offsets = [0, 128], sizes = [8, 128], strides = [1, 1]} : vector<8x384xf32> to vector<8x128xf32>
    %115 = vector.extract_strided_slice %110 {offsets = [0, 256], sizes = [8, 128], strides = [1, 1]} : vector<8x384xf32> to vector<8x128xf32>
    %116 = arith.mulf %114, %95 : vector<8x128xf32>
    %117 = arith.mulf %113, %112 : vector<8x128xf32>
    %118 = arith.addf %116, %117 : vector<8x128xf32>
    %119 = math.tanh %118 : vector<8x128xf32>
    %120 = arith.mulf %115, %119 : vector<8x128xf32>
    %c5_i32 = arith.constant 5 : i32
    %121 = arith.index_cast %c5_i32 : i32 to index
    %c0_36 = arith.constant 0 : index
    %c0_37 = arith.constant 0 : index
    %122 = vector.load %arg2[%121, %c0_36, %c0_37] : memref<8x8x512xf32, #tpu.memory_space<vmem>>, vector<1x8x512xf32>
    %123 = vector.shape_cast %122 : vector<1x8x512xf32> to vector<8x512xf32>
    %cst_38 = arith.constant dense<0.000000e+00> : vector<8x512xf32>
    %124 = tpu.matmul %120, %3, %cst_38 {dimension_numbers = #tpu.dot_dimension_numbers<[1], [0], [0], [1], [0, 0, 1, 1], [], []>} : vector<8x128xf32>, vector<128x512xf32>, vector<8x512xf32> -> vector<8x512xf32>
    %125 = arith.addf %123, %124 : vector<8x512xf32>
    %126 = vector.extract_strided_slice %125 {offsets = [0, 0], sizes = [8, 384], strides = [1, 1]} : vector<8x512xf32> to vector<8x384xf32>
    %cst_39 = arith.constant 5.000000e-01 : f32
    %127 = vector.broadcast %cst_39 : f32 to vector<8x384xf32>
    %128 = arith.mulf %127, %126 : vector<8x384xf32>
    %129 = math.tanh %128 : vector<8x384xf32>
    %cst_40 = arith.constant 5.000000e-01 : f32
    %130 = vector.broadcast %cst_40 : f32 to vector<8x384xf32>
    %131 = arith.mulf %130, %129 : vector<8x384xf32>
    %cst_41 = arith.constant 5.000000e-01 : f32
    %132 = vector.broadcast %cst_41 : f32 to vector<8x384xf32>
    %133 = arith.addf %132, %131 : vector<8x384xf32>
    %134 = vector.extract_strided_slice %125 {offsets = [0, 384], sizes = [8, 128], strides = [1, 1]} : vector<8x512xf32> to vector<8x128xf32>
    %135 = math.tanh %134 : vector<8x128xf32>
    %136 = vector.extract_strided_slice %133 {offsets = [0, 0], sizes = [8, 128], strides = [1, 1]} : vector<8x384xf32> to vector<8x128xf32>
    %137 = vector.extract_strided_slice %133 {offsets = [0, 128], sizes = [8, 128], strides = [1, 1]} : vector<8x384xf32> to vector<8x128xf32>
    %138 = vector.extract_strided_slice %133 {offsets = [0, 256], sizes = [8, 128], strides = [1, 1]} : vector<8x384xf32> to vector<8x128xf32>
    %139 = arith.mulf %137, %118 : vector<8x128xf32>
    %140 = arith.mulf %136, %135 : vector<8x128xf32>
    %141 = arith.addf %139, %140 : vector<8x128xf32>
    %142 = math.tanh %141 : vector<8x128xf32>
    %143 = arith.mulf %138, %142 : vector<8x128xf32>
    %c6_i32 = arith.constant 6 : i32
    %144 = arith.index_cast %c6_i32 : i32 to index
    %c0_42 = arith.constant 0 : index
    %c0_43 = arith.constant 0 : index
    %145 = vector.load %arg2[%144, %c0_42, %c0_43] : memref<8x8x512xf32, #tpu.memory_space<vmem>>, vector<1x8x512xf32>
    %146 = vector.shape_cast %145 : vector<1x8x512xf32> to vector<8x512xf32>
    %cst_44 = arith.constant dense<0.000000e+00> : vector<8x512xf32>
    %147 = tpu.matmul %143, %3, %cst_44 {dimension_numbers = #tpu.dot_dimension_numbers<[1], [0], [0], [1], [0, 0, 1, 1], [], []>} : vector<8x128xf32>, vector<128x512xf32>, vector<8x512xf32> -> vector<8x512xf32>
    %148 = arith.addf %146, %147 : vector<8x512xf32>
    %149 = vector.extract_strided_slice %148 {offsets = [0, 0], sizes = [8, 384], strides = [1, 1]} : vector<8x512xf32> to vector<8x384xf32>
    %cst_45 = arith.constant 5.000000e-01 : f32
    %150 = vector.broadcast %cst_45 : f32 to vector<8x384xf32>
    %151 = arith.mulf %150, %149 : vector<8x384xf32>
    %152 = math.tanh %151 : vector<8x384xf32>
    %cst_46 = arith.constant 5.000000e-01 : f32
    %153 = vector.broadcast %cst_46 : f32 to vector<8x384xf32>
    %154 = arith.mulf %153, %152 : vector<8x384xf32>
    %cst_47 = arith.constant 5.000000e-01 : f32
    %155 = vector.broadcast %cst_47 : f32 to vector<8x384xf32>
    %156 = arith.addf %155, %154 : vector<8x384xf32>
    %157 = vector.extract_strided_slice %148 {offsets = [0, 384], sizes = [8, 128], strides = [1, 1]} : vector<8x512xf32> to vector<8x128xf32>
    %158 = math.tanh %157 : vector<8x128xf32>
    %159 = vector.extract_strided_slice %156 {offsets = [0, 0], sizes = [8, 128], strides = [1, 1]} : vector<8x384xf32> to vector<8x128xf32>
    %160 = vector.extract_strided_slice %156 {offsets = [0, 128], sizes = [8, 128], strides = [1, 1]} : vector<8x384xf32> to vector<8x128xf32>
    %161 = vector.extract_strided_slice %156 {offsets = [0, 256], sizes = [8, 128], strides = [1, 1]} : vector<8x384xf32> to vector<8x128xf32>
    %162 = arith.mulf %160, %141 : vector<8x128xf32>
    %163 = arith.mulf %159, %158 : vector<8x128xf32>
    %164 = arith.addf %162, %163 : vector<8x128xf32>
    %165 = math.tanh %164 : vector<8x128xf32>
    %166 = arith.mulf %161, %165 : vector<8x128xf32>
    %c7_i32 = arith.constant 7 : i32
    %167 = arith.index_cast %c7_i32 : i32 to index
    %c0_48 = arith.constant 0 : index
    %c0_49 = arith.constant 0 : index
    %168 = vector.load %arg2[%167, %c0_48, %c0_49] : memref<8x8x512xf32, #tpu.memory_space<vmem>>, vector<1x8x512xf32>
    %169 = vector.shape_cast %168 : vector<1x8x512xf32> to vector<8x512xf32>
    %cst_50 = arith.constant dense<0.000000e+00> : vector<8x512xf32>
    %170 = tpu.matmul %166, %3, %cst_50 {dimension_numbers = #tpu.dot_dimension_numbers<[1], [0], [0], [1], [0, 0, 1, 1], [], []>} : vector<8x128xf32>, vector<128x512xf32>, vector<8x512xf32> -> vector<8x512xf32>
    %171 = arith.addf %169, %170 : vector<8x512xf32>
    %172 = vector.extract_strided_slice %171 {offsets = [0, 0], sizes = [8, 384], strides = [1, 1]} : vector<8x512xf32> to vector<8x384xf32>
    %cst_51 = arith.constant 5.000000e-01 : f32
    %173 = vector.broadcast %cst_51 : f32 to vector<8x384xf32>
    %174 = arith.mulf %173, %172 : vector<8x384xf32>
    %175 = math.tanh %174 : vector<8x384xf32>
    %cst_52 = arith.constant 5.000000e-01 : f32
    %176 = vector.broadcast %cst_52 : f32 to vector<8x384xf32>
    %177 = arith.mulf %176, %175 : vector<8x384xf32>
    %cst_53 = arith.constant 5.000000e-01 : f32
    %178 = vector.broadcast %cst_53 : f32 to vector<8x384xf32>
    %179 = arith.addf %178, %177 : vector<8x384xf32>
    %180 = vector.extract_strided_slice %171 {offsets = [0, 384], sizes = [8, 128], strides = [1, 1]} : vector<8x512xf32> to vector<8x128xf32>
    %181 = math.tanh %180 : vector<8x128xf32>
    %182 = vector.extract_strided_slice %179 {offsets = [0, 0], sizes = [8, 128], strides = [1, 1]} : vector<8x384xf32> to vector<8x128xf32>
    %183 = vector.extract_strided_slice %179 {offsets = [0, 128], sizes = [8, 128], strides = [1, 1]} : vector<8x384xf32> to vector<8x128xf32>
    %184 = vector.extract_strided_slice %179 {offsets = [0, 256], sizes = [8, 128], strides = [1, 1]} : vector<8x384xf32> to vector<8x128xf32>
    %185 = arith.mulf %183, %164 : vector<8x128xf32>
    %186 = arith.mulf %182, %181 : vector<8x128xf32>
    %187 = arith.addf %185, %186 : vector<8x128xf32>
    %188 = math.tanh %187 : vector<8x128xf32>
    %189 = arith.mulf %184, %188 : vector<8x128xf32>
    %c8_i32 = arith.constant 8 : i32
    %c0_54 = arith.constant 0 : index
    %c0_55 = arith.constant 0 : index
    %190 = vector.load %arg5[%c0_54, %c0_55] : memref<8x128xf32, #tpu.memory_space<vmem>>, vector<8x128xf32>
    tpu.vector_store %arg5[%c0_54, %c0_55], %189 {strides = array<i32>} : memref<8x128xf32, #tpu.memory_space<vmem>>, vector<8x128xf32>,
    %c0_56 = arith.constant 0 : index
    %c0_57 = arith.constant 0 : index
    %191 = vector.load %arg6[%c0_56, %c0_57] : memref<8x128xf32, #tpu.memory_space<vmem>>, vector<8x128xf32>
    tpu.vector_store %arg6[%c0_56, %c0_57], %187 {strides = array<i32>} : memref<8x128xf32, #tpu.memory_space<vmem>>, vector<8x128xf32>,
    %c0_i32_58 = arith.constant 0 : i32
    %192 = arith.cmpi eq, %arg1, %c0_i32_58 : i32
    %193 = arith.extui %192 : i1 to i32
    %c0_i32_59 = arith.constant 0 : i32
    %194 = arith.cmpi ne, %193, %c0_i32_59 : i32
    scf.if %194 {
      %c0_60 = arith.constant 0 : index
      %c0_61 = arith.constant 0 : index
      %195 = vector.load %arg4[%c0_60, %c0_61] : memref<8x128xf32, #tpu.memory_space<vmem>>, vector<8x128xf32>
      tpu.vector_store %arg4[%c0_60, %c0_61], %189 {strides = array<i32>} : memref<8x128xf32, #tpu.memory_space<vmem>>, vector<8x128xf32>,
    } else {
    }
    return
  }
  func.func @transform_0(%arg0: i32, %arg1: i32) -> (i32, i32, i32) {
    %c0_i32 = arith.constant 0 : i32
    %c0_i32_0 = arith.constant 0 : i32
    return %arg1, %arg0, %c0_i32 : i32, i32, i32
  }
  func.func @transform_1(%arg0: i32, %arg1: i32) -> (i32, i32) {
    %c0_i32 = arith.constant 0 : i32
    %c0_i32_0 = arith.constant 0 : i32
    %c0_i32_1 = arith.constant 0 : i32
    return %c0_i32, %c0_i32_0 : i32, i32
  }
  func.func @transform_2(%arg0: i32, %arg1: i32) -> (i32, i32) {
    %c0_i32 = arith.constant 0 : i32
    %c0_i32_0 = arith.constant 0 : i32
    return %arg0, %c0_i32 : i32, i32
  }
}

</mosaic_0001>

<llo_original>
// kernel: tpu_custom_call.1
$region0: #{tpu_custom_call.1}
  #allocation0 [shape = 'u32[]', space=smem, size = 0x4, offset = 0x4, fixed_abs, tag = 'smem constant byte address 0x4 - core index']
  #allocation1 [shape = 'u32[144,128]{1,0:T(1,128)}', space=vmem, size = 0x12000, scoped, tag = 'internal scratch']
  #allocation2 [shape = 'f32[8,128]{1,0:T(8,128)}', space=vmem, size = 0x1000, scoped, tag = 'scratch operand']
  #allocation3 [shape = 'f32[8,128]{1,0:T(8,128)}', space=vmem, size = 0x1000, scoped, tag = 'scratch operand']
  %s0 = inlined_call_operand.hbm [shape: f32[8,8,512], index: 0, kind: input, shape index: {}]
  %s1 = inlined_call_operand.hbm [shape: f32[128,512], index: 1, kind: input, shape index: {}]
  %s2 = inlined_call_operand.hbm [shape: f32[8,128], index: 2, kind: output, shape index: {}]
  %s3 = sld [smem:[#allocation0]]
  $region34: #{tpu_custom_call.1} parent=0
    _
  %s5 = ssub.s32 1, %s3
  %s6 = scalar_select 0, %s5, %s3
  $region1: #{tpu_custom_call.1} parent=0
    #allocation4 [shape = 'u8[131072]{0}', space=vmem, size = 0x20000, scoped, tag = 'input window, operand 0, single buffered']
    #allocation5 [shape = 's32[1]{0}', space=sflag, size = 0x4, scoped, tag = 'scoped memory for tpu_custom_call.1']
    #allocation6 [shape = 's32[1]{0}', space=sflag, size = 0x4, scoped, tag = 'scoped memory for tpu_custom_call.1']
    #allocation7 [shape = 'u8[262144]{0}', space=vmem, size = 0x40000, scoped, tag = 'input window, operand 1, single buffered']
    #allocation8 [shape = 's32[1]{0}', space=sflag, size = 0x4, scoped, tag = 'scoped memory for tpu_custom_call.1']
    #allocation9 [shape = 'u8[4096]{0}', space=vmem, size = 0x1000, scoped, tag = 'output window, operand 0, single buffered']
    %7 = vsyncpa [#allocation5], 0
    %8 = vsyncpa [#allocation8], 0
    %9 = vsyncpa [#allocation6], 0
    // Predicated region
    $region2: #{tpu_custom_call.1} parent=1 // pred_check
      _
    $region3: #{tpu_custom_call.1} parent=1 // pred_check_branch
      %11 = sbr.rel (0) target = $region5
    $region4: #{tpu_custom_call.1} parent=1 // pred_region
      %s13 = ssub.s32 4096, 4096
      %14 = vsyncadd [#allocation5], %s13
      %s15 = sshll.u32 [#allocation4], 4
      %s16 = int_to_ptr.vmem [resolvable:$true] %s15
      %21 = dma.hbm_to_vmem [thread:$0]  %s0, 4096, %s16, [#allocation5], 512, 512, 32
    $region5: #{tpu_custom_call.1} parent=1 // pred_fallthru
      _
    // Predicated region
    $region6: #{tpu_custom_call.1} parent=1 // pred_check
      _
    $region7: #{tpu_custom_call.1} parent=1 // pred_check_branch
      %23 = sbr.rel (0) target = $region9
    $region8: #{tpu_custom_call.1} parent=1 // pred_region
      %s25 = ssub.s32 8192, 8192
      %26 = vsyncadd [#allocation8], %s25
      %s27 = sshll.u32 [#allocation7], 4
      %s28 = int_to_ptr.vmem [resolvable:$true] %s27
      %33 = dma.hbm_to_vmem [thread:$0]  %s1, 8192, %s28, [#allocation8], 512, 512, 32
    $region9: #{tpu_custom_call.1} parent=1 // pred_fallthru
      _
    // Predicated region
    $region10: #{tpu_custom_call.1} parent=1 // pred_check
      _
    $region11: #{tpu_custom_call.1} parent=1 // pred_check_branch
      %35 = sbr.rel (0) target = $region13
    $region12: #{tpu_custom_call.1} parent=1 // pred_region
      %36 = dma.done [#allocation5], 4096
    $region13: #{tpu_custom_call.1} parent=1 // pred_fallthru
      _
    // Predicated region
    $region14: #{tpu_custom_call.1} parent=1 // pred_check
      _
    $region15: #{tpu_custom_call.1} parent=1 // pred_check_branch
      %38 = sbr.rel (0) target = $region17
    $region16: #{tpu_custom_call.1} parent=1 // pred_region
      %39 = dma.done [#allocation8], 8192
    $region17: #{tpu_custom_call.1} parent=1 // pred_fallthru
      _
    %p40 = scmp.eq.s32.totalorder 0, 0
    // Predicated region
    $region18: #{tpu_custom_call.1} parent=1 // pred_check
      %p41 = pneg %p40
    $region19: #{tpu_custom_call.1} parent=1 // pred_check_branch
      %43 = sbr.rel (%p41) target = $region21
    $region20: #{tpu_custom_call.1} parent=1 // pred_region
      %44 = vst [vmem:[#allocation2] sm:$0xff] 0.0
      %45 = vst [vmem:[#allocation3] sm:$0xff] 0.0
    $region21: #{tpu_custom_call.1} parent=1 // pred_fallthru
      _
    %v46 = vld [vmem:[#allocation7] sm:$0xff]
    %v47 = vld [vmem:[#allocation7 + $0x8] sm:$0xff]
    %v48 = vld [vmem:[#allocation7 + $0x10] sm:$0xff]
    %v49 = vld [vmem:[#allocation7 + $0x18] sm:$0xff]
    %v50 = vld [vmem:[#allocation7 + $0x20] sm:$0xff]
    %v51 = vld [vmem:[#allocation7 + $0x28] sm:$0xff]
    %v52 = vld [vmem:[#allocation7 + $0x30] sm:$0xff]
    %v53 = vld [vmem:[#allocation7 + $0x38] sm:$0xff]
    %v54 = vld [vmem:[#allocation7 + $0x40] sm:$0xff]
    %v55 = vld [vmem:[#allocation7 + $0x48] sm:$0xff]
    %v56 = vld [vmem:[#allocation7 + $0x50] sm:$0xff]
    %v57 = vld [vmem:[#allocation7 + $0x58] sm:$0xff]
    %v58 = vld [vmem:[#allocation7 + $0x60] sm:$0xff]
    %v59 = vld [vmem:[#allocation7 + $0x68] sm:$0xff]
    %v60 = vld [vmem:[#allocation7 + $0x70] sm:$0xff]
    %v61 = vld [vmem:[#allocation7 + $0x78] sm:$0xff]
    %v62 = vld [vmem:[#allocation7 + $0x80] sm:$0xff]
    %v63 = vld [vmem:[#allocation7 + $0x88] sm:$0xff]
    %v64 = vld [vmem:[#allocation7 + $0x90] sm:$0xff]
    %v65 = vld [vmem:[#allocation7 + $0x98] sm:$0xff]
    %v66 = vld [vmem:[#allocation7 + $0xa0] sm:$0xff]
    %v67 = vld [vmem:[#allocation7 + $0xa8] sm:$0xff]
    %v68 = vld [vmem:[#allocation7 + $0xb0] sm:$0xff]
    %v69 = vld [vmem:[#allocation7 + $0xb8] sm:$0xff]
    %v70 = vld [vmem:[#allocation7 + $0xc0] sm:$0xff]
    %v71 = vld [vmem:[#allocation7 + $0xc8] sm:$0xff]
    %v72 = vld [vmem:[#allocation7 + $0xd0] sm:$0xff]
    %v73 = vld [vmem:[#allocation7 + $0xd8] sm:$0xff]
    %v74 = vld [vmem:[#allocation7 + $0xe0] sm:$0xff]
    %v75 = vld [vmem:[#allocation7 + $0xe8] sm:$0xff]
    %v76 = vld [vmem:[#allocation7 + $0xf0] sm:$0xff]
    %v77 = vld [vmem:[#allocation7 + $0xf8] sm:$0xff]
    %v78 = vld [vmem:[#allocation7 + $0x100] sm:$0xff]
    %v79 = vld [vmem:[#allocation7 + $0x108] sm:$0xff]
    %v80 = vld [vmem:[#allocation7 + $0x110] sm:$0xff]
    %v81 = vld [vmem:[#allocation7 + $0x118] sm:$0xff]
    %v82 = vld [vmem:[#allocation7 + $0x120] sm:$0xff]
    %v83 = vld [vmem:[#allocation7 + $0x128] sm:$0xff]
    %v84 = vld [vmem:[#allocation7 + $0x130] sm:$0xff]
    %v85 = vld [vmem:[#allocation7 + $0x138] sm:$0xff]
    %v86 = vld [vmem:[#allocation7 + $0x140] sm:$0xff]
    %v87 = vld [vmem:[#allocation7 + $0x148] sm:$0xff]
    %v88 = vld [vmem:[#allocation7 + $0x150] sm:$0xff]
    %v89 = vld [vmem:[#allocation7 + $0x158] sm:$0xff]
    %v90 = vld [vmem:[#allocation7 + $0x160] sm:$0xff]
    %v91 = vld [vmem:[#allocation7 + $0x168] sm:$0xff]
    %v92 = vld [vmem:[#allocation7 + $0x170] sm:$0xff]
    %v93 = vld [vmem:[#allocation7 + $0x178] sm:$0xff]
    %v94 = vld [vmem:[#allocation7 + $0x180] sm:$0xff]
    %v95 = vld [vmem:[#allocation7 + $0x188] sm:$0xff]
    %v96 = vld [vmem:[#allocation7 + $0x190] sm:$0xff]
    %v97 = vld [vmem:[#allocation7 + $0x198] sm:$0xff]
    %v98 = vld [vmem:[#allocation7 + $0x1a0] sm:$0xff]
    %v99 = vld [vmem:[#allocation7 + $0x1a8] sm:$0xff]
    %v100 = vld [vmem:[#allocation7 + $0x1b0] sm:$0xff]
    %v101 = vld [vmem:[#allocation7 + $0x1b8] sm:$0xff]
    %v102 = vld [vmem:[#allocation7 + $0x1c0] sm:$0xff]
    %v103 = vld [vmem:[#allocation7 + $0x1c8] sm:$0xff]
    %v104 = vld [vmem:[#allocation7 + $0x1d0] sm:$0xff]
    %v105 = vld [vmem:[#allocation7 + $0x1d8] sm:$0xff]
    %v106 = vld [vmem:[#allocation7 + $0x1e0] sm:$0xff]
    %v107 = vld [vmem:[#allocation7 + $0x1e8] sm:$0xff]
    %v108 = vld [vmem:[#allocation7 + $0x1f0] sm:$0xff]
    %v109 = vld [vmem:[#allocation7 + $0x1f8] sm:$0xff]
    %v110 = vld [vmem:[#allocation2] sm:$0xff]
    %v111 = vld [vmem:[#allocation3] sm:$0xff]
    %v112 = vld [vmem:[#allocation4] sm:$0xff]
    %v113 = vld [vmem:[#allocation4 + $0x8] sm:$0xff]
    %v114 = vld [vmem:[#allocation4 + $0x10] sm:$0xff]
    %v115 = vld [vmem:[#allocation4 + $0x18] sm:$0xff]
    %116 = vmatprep.subr.mxu0 %v47
    %117 = vmatpush1.msra.mxu0 %v46
    %118 = vmatprep.subr.mxu0 %v51
    %119 = vmatpush1.msra.mxu0 %v50
    %120 = vmatprep.subr.mxu0 %v55
    %121 = vmatpush1.msra.mxu0 %v54
    %122 = vmatprep.subr.mxu0 %v59
    %123 = vmatpush1.msra.mxu0 %v58
    %124 = vmatprep.subr.mxu0 %v63
    %125 = vmatpush1.msra.mxu0 %v62
    %126 = vmatprep.subr.mxu0 %v67
    %127 = vmatpush1.msra.mxu0 %v66
    %128 = vmatprep.subr.mxu0 %v71
    %129 = vmatpush1.msra.mxu0 %v70
    %130 = vmatprep.subr.mxu0 %v75
    %131 = vmatpush1.msra.mxu0 %v74
    %132 = vmatprep.subr.mxu0 %v79
    %133 = vmatpush1.msra.mxu0 %v78
    %134 = vmatprep.subr.mxu0 %v83
    %135 = vmatpush1.msra.mxu0 %v82
    %136 = vmatprep.subr.mxu0 %v87
    %137 = vmatpush1.msra.mxu0 %v86
    %138 = vmatprep.subr.mxu0 %v91
    %139 = vmatpush1.msra.mxu0 %v90
    %140 = vmatprep.subr.mxu0 %v95
    %141 = vmatpush1.msra.mxu0 %v94
    %142 = vmatprep.subr.mxu0 %v99
    %143 = vmatpush1.msra.mxu0 %v98
    %144 = vmatprep.subr.mxu0 %v103
    %145 = vmatpush1.msra.mxu0 %v102
    %146 = vmatprep.subr.mxu0 %v107
    %147 = vmatpush1.msra.mxu0 %v106
    %148 = vmatprep.subr.mxu0 0.0
    %149 = vmatpush1.msra.mxu0 0.0
    %150 = vmatprep.subr.mxu0 0.0
    %151 = vmatpush1.msra.mxu0 0.0
    %152 = vmatprep.subr.mxu0 0.0
    %153 = vmatpush1.msra.mxu0 0.0
    %154 = vmatprep.subr.mxu0 0.0
    %155 = vmatpush1.msra.mxu0 0.0
    %156 = vmatprep.subr.mxu0 0.0
    %157 = vmatpush1.msra.mxu0 0.0
    %158 = vmatprep.subr.mxu0 0.0
    %159 = vmatpush1.msra.mxu0 0.0
    %160 = vmatprep.subr.mxu0 0.0
    %161 = vmatpush1.msra.mxu0 0.0
    %162 = vmatprep.subr.mxu0 0.0
    %163 = vmatpush1.msra.mxu0 0.0
    %164 = vmatprep.subr.mxu0 0.0
    %165 = vmatpush1.msra.mxu0 0.0
    %166 = vmatprep.subr.mxu0 0.0
    %167 = vmatpush1.msra.mxu0 0.0
    %168 = vmatprep.subr.mxu0 0.0
    %169 = vmatpush1.msra.mxu0 0.0
    %170 = vmatprep.subr.mxu0 0.0
    %171 = vmatpush1.msra.mxu0 0.0
    %172 = vmatprep.subr.mxu0 0.0
    %173 = vmatpush1.msra.mxu0 0.0
    %174 = vmatprep.subr.mxu0 0.0
    %175 = vmatpush1.msra.mxu0 0.0
    %176 = vmatprep.subr.mxu0 0.0
    %177 = vmatpush1.msra.mxu0 0.0
    %178 = vmatprep.subr.mxu0 0.0
    %179 = vmatpush1.msra.mxu0 0.0
    %180 = vmatprep.mubr.f32.mxu0 0.0
    %181 = vmatmul.mubr.f32.gmra.mrb[0].mxu0 %v110
    %v182 = vpop.f32.mrb[0].mxu0
    %v183 = vadd.f32 0.0, %v182
    %v184 = vpop.f32.mrb[0].mxu0
    %v185 = vadd.f32 0.0, %v184
    %186 = vdwg.mxu0
    %187 = vmatprep.subr.mxu0 %v49
    %188 = vmatpush1.msra.mxu0 %v48
    %189 = vmatprep.subr.mxu0 %v53
    %190 = vmatpush1.msra.mxu0 %v52
    %191 = vmatprep.subr.mxu0 %v57
    %192 = vmatpush1.msra.mxu0 %v56
    %193 = vmatprep.subr.mxu0 %v61
    %194 = vmatpush1.msra.mxu0 %v60
    %195 = vmatprep.subr.mxu0 %v65
    %196 = vmatpush1.msra.mxu0 %v64
    %197 = vmatprep.subr.mxu0 %v69
    %198 = vmatpush1.msra.mxu0 %v68
    %199 = vmatprep.subr.mxu0 %v73
    %200 = vmatpush1.msra.mxu0 %v72
    %201 = vmatprep.subr.mxu0 %v77
    %202 = vmatpush1.msra.mxu0 %v76
    %203 = vmatprep.subr.mxu0 %v81
    %204 = vmatpush1.msra.mxu0 %v80
    %205 = vmatprep.subr.mxu0 %v85
    %206 = vmatpush1.msra.mxu0 %v84
    %207 = vmatprep.subr.mxu0 %v89
    %208 = vmatpush1.msra.mxu0 %v88
    %209 = vmatprep.subr.mxu0 %v93
    %210 = vmatpush1.msra.mxu0 %v92
    %211 = vmatprep.subr.mxu0 %v97
    %212 = vmatpush1.msra.mxu0 %v96
    %213 = vmatprep.subr.mxu0 %v101
    %214 = vmatpush1.msra.mxu0 %v100
    %215 = vmatprep.subr.mxu0 %v105
    %216 = vmatpush1.msra.mxu0 %v104
    %217 = vmatprep.subr.mxu0 %v109
    %218 = vmatpush1.msra.mxu0 %v108
    %219 = vmatprep.subr.mxu0 0.0
    %220 = vmatpush1.msra.mxu0 0.0
    %221 = vmatprep.subr.mxu0 0.0
    %222 = vmatpush1.msra.mxu0 0.0
    %223 = vmatprep.subr.mxu0 0.0
    %224 = vmatpush1.msra.mxu0 0.0
    %225 = vmatprep.subr.mxu0 0.0
    %226 = vmatpush1.msra.mxu0 0.0
    %227 = vmatprep.subr.mxu0 0.0
    %228 = vmatpush1.msra.mxu0 0.0
    %229 = vmatprep.subr.mxu0 0.0
    %230 = vmatpush1.msra.mxu0 0.0
    %231 = vmatprep.subr.mxu0 0.0
    %232 = vmatpush1.msra.mxu0 0.0
    %233 = vmatprep.subr.mxu0 0.0
    %234 = vmatpush1.msra.mxu0 0.0
    %235 = vmatprep.subr.mxu0 0.0
    %236 = vmatpush1.msra.mxu0 0.0
    %237 = vmatprep.subr.mxu0 0.0
    %238 = vmatpush1.msra.mxu0 0.0
    %239 = vmatprep.subr.mxu0 0.0
    %240 = vmatpush1.msra.mxu0 0.0
    %241 = vmatprep.subr.mxu0 0.0
    %242 = vmatpush1.msra.mxu0 0.0
    %243 = vmatprep.subr.mxu0 0.0
    %244 = vmatpush1.msra.mxu0 0.0
    %245 = vmatprep.subr.mxu0 0.0
    %246 = vmatpush1.msra.mxu0 0.0
    %247 = vmatprep.subr.mxu0 0.0
    %248 = vmatpush1.msra.mxu0 0.0
    %249 = vmatprep.subr.mxu0 0.0
    %250 = vmatpush1.msra.mxu0 0.0
    %251 = vmatprep.mubr.f32.mxu0 0.0
    %252 = vmatmul.mubr.f32.gmra.mrb[0].mxu0 %v110
    %v253 = vpop.f32.mrb[0].mxu0
    %v254 = vadd.f32 0.0, %v253
    %v255 = vpop.f32.mrb[0].mxu0
    %v256 = vadd.f32 0.0, %v255
    %257 = vdwg.mxu0
    %v258 = vadd.f32 %v112, %v183
    %v259 = vadd.f32 %v113, %v185
    %v260 = vadd.f32 %v114, %v254
    %v261 = vadd.f32 %v115, %v256
    %v262 = vmul.f32 %v258, 0.5
    %v263 = vmul.f32 %v259, 0.5
    %v264 = vmul.f32 %v260, 0.5
    %v265 = vtanh.pop %v262
    %v266 = vtanh.pop %v263
    %v267 = vtanh.pop %v264
    %v268 = vmul.f32 %v265, 0.5
    %v269 = vmul.f32 %v266, 0.5
    %v270 = vmul.f32 %v267, 0.5
    %v271 = vadd.f32 %v268, 0.5
    %v272 = vadd.f32 %v269, 0.5
    %v273 = vadd.f32 %v270, 0.5
    %v274 = vtanh.pop %v261
    %v275 = vmul.f32 %v272, %v111
    %v276 = vmul.f32 %v271, %v274
    %v277 = vadd.f32 %v275, %v276
    %v278 = vtanh.pop %v277
    %v279 = vmul.f32 %v273, %v278
    %s280 = scalar_lea.vmem [#allocation4], 32
    %v281 = vld [vmem:[%s280] sm:$0xff]
    %v282 = vld [vmem:[%s280 + $0x8] sm:$0xff]
    %v283 = vld [vmem:[%s280 + $0x10] sm:$0xff]
    %v284 = vld [vmem:[%s280 + $0x18] sm:$0xff]
    %285 = vmatprep.subr.mxu0 %v47
    %286 = vmatpush1.msra.mxu0 %v46
    %287 = vmatprep.subr.mxu0 %v51
    %288 = vmatpush1.msra.mxu0 %v50
    %289 = vmatprep.subr.mxu0 %v55
    %290 = vmatpush1.msra.mxu0 %v54
    %291 = vmatprep.subr.mxu0 %v59
    %292 = vmatpush1.msra.mxu0 %v58
    %293 = vmatprep.subr.mxu0 %v63
    %294 = vmatpush1.msra.mxu0 %v62
    %295 = vmatprep.subr.mxu0 %v67
    %296 = vmatpush1.msra.mxu0 %v66
    %297 = vmatprep.subr.mxu0 %v71
    %298 = vmatpush1.msra.mxu0 %v70
    %299 = vmatprep.subr.mxu0 %v75
    %300 = vmatpush1.msra.mxu0 %v74
    %301 = vmatprep.subr.mxu0 %v79
    %302 = vmatpush1.msra.mxu0 %v78
    %303 = vmatprep.subr.mxu0 %v83
    %304 = vmatpush1.msra.mxu0 %v82
    %305 = vmatprep.subr.mxu0 %v87
    %306 = vmatpush1.msra.mxu0 %v86
    %307 = vmatprep.subr.mxu0 %v91
    %308 = vmatpush1.msra.mxu0 %v90
    %309 = vmatprep.subr.mxu0 %v95
    %310 = vmatpush1.msra.mxu0 %v94
    %311 = vmatprep.subr.mxu0 %v99
    %312 = vmatpush1.msra.mxu0 %v98
    %313 = vmatprep.subr.mxu0 %v103
    %314 = vmatpush1.msra.mxu0 %v102
    %315 = vmatprep.subr.mxu0 %v107
    %316 = vmatpush1.msra.mxu0 %v106
    %317 = vmatprep.subr.mxu0 0.0
    %318 = vmatpush1.msra.mxu0 0.0
    %319 = vmatprep.subr.mxu0 0.0
    %320 = vmatpush1.msra.mxu0 0.0
    %321 = vmatprep.subr.mxu0 0.0
    %322 = vmatpush1.msra.mxu0 0.0
    %323 = vmatprep.subr.mxu0 0.0
    %324 = vmatpush1.msra.mxu0 0.0
    %325 = vmatprep.subr.mxu0 0.0
    %326 = vmatpush1.msra.mxu0 0.0
    %327 = vmatprep.subr.mxu0 0.0
    %328 = vmatpush1.msra.mxu0 0.0
    %329 = vmatprep.subr.mxu0 0.0
    %330 = vmatpush1.msra.mxu0 0.0
    %331 = vmatprep.subr.mxu0 0.0
    %332 = vmatpush1.msra.mxu0 0.0
    %333 = vmatprep.subr.mxu0 0.0
    %334 = vmatpush1.msra.mxu0 0.0
    %335 = vmatprep.subr.mxu0 0.0
    %336 = vmatpush1.msra.mxu0 0.0
    %337 = vmatprep.subr.mxu0 0.0
    %338 = vmatpush1.msra.mxu0 0.0
    %339 = vmatprep.subr.mxu0 0.0
    %340 = vmatpush1.msra.mxu0 0.0
    %341 = vmatprep.subr.mxu0 0.0
    %342 = vmatpush1.msra.mxu0 0.0
    %343 = vmatprep.subr.mxu0 0.0
    %344 = vmatpush1.msra.mxu0 0.0
    %345 = vmatprep.subr.mxu0 0.0
    %346 = vmatpush1.msra.mxu0 0.0
    %347 = vmatprep.subr.mxu0 0.0
    %348 = vmatpush1.msra.mxu0 0.0
    %349 = vmatprep.mubr.f32.mxu0 0.0
    %350 = vmatmul.mubr.f32.gmra.mrb[0].mxu0 %v279
    %v351 = vpop.f32.mrb[0].mxu0
    %v352 = vadd.f32 0.0, %v351
    %v353 = vpop.f32.mrb[0].mxu0
    %v354 = vadd.f32 0.0, %v353
    %355 = vdwg.mxu0
    %356 = vmatprep.subr.mxu0 %v49
    %357 = vmatpush1.msra.mxu0 %v48
    %358 = vmatprep.subr.mxu0 %v53
    %359 = vmatpush1.msra.mxu0 %v52
    %360 = vmatprep.subr.mxu0 %v57
    %361 = vmatpush1.msra.mxu0 %v56
    %362 = vmatprep.subr.mxu0 %v61
    %363 = vmatpush1.msra.mxu0 %v60
    %364 = vmatprep.subr.mxu0 %v65
    %365 = vmatpush1.msra.mxu0 %v64
    %366 = vmatprep.subr.mxu0 %v69
    %367 = vmatpush1.msra.mxu0 %v68
    %368 = vmatprep.subr.mxu0 %v73
    %369 = vmatpush1.msra.mxu0 %v72
    %370 = vmatprep.subr.mxu0 %v77
    %371 = vmatpush1.msra.mxu0 %v76
    %372 = vmatprep.subr.mxu0 %v81
    %373 = vmatpush1.msra.mxu0 %v80
    %374 = vmatprep.subr.mxu0 %v85
    %375 = vmatpush1.msra.mxu0 %v84
    %376 = vmatprep.subr.mxu0 %v89
    %377 = vmatpush1.msra.mxu0 %v88
    %378 = vmatprep.subr.mxu0 %v93
    %379 = vmatpush1.msra.mxu0 %v92
    %380 = vmatprep.subr.mxu0 %v97
    %381 = vmatpush1.msra.mxu0 %v96
    %382 = vmatprep.subr.mxu0 %v101
    %383 = vmatpush1.msra.mxu0 %v100
    %384 = vmatprep.subr.mxu0 %v105
    %385 = vmatpush1.msra.mxu0 %v104
    %386 = vmatprep.subr.mxu0 %v109
    %387 = vmatpush1.msra.mxu0 %v108
    %388 = vmatprep.subr.mxu0 0.0
    %389 = vmatpush1.msra.mxu0 0.0
    %390 = vmatprep.subr.mxu0 0.0
    %391 = vmatpush1.msra.mxu0 0.0
    %392 = vmatprep.subr.mxu0 0.0
    %393 = vmatpush1.msra.mxu0 0.0
    %394 = vmatprep.subr.mxu0 0.0
    %395 = vmatpush1.msra.mxu0 0.0
    %396 = vmatprep.subr.mxu0 0.0
    %397 = vmatpush1.msra.mxu0 0.0
    %398 = vmatprep.subr.mxu0 0.0
    %399 = vmatpush1.msra.mxu0 0.0
    %400 = vmatprep.subr.mxu0 0.0
    %401 = vmatpush1.msra.mxu0 0.0
    %402 = vmatprep.subr.mxu0 0.0
    %403 = vmatpush1.msra.mxu0 0.0
    %404 = vmatprep.subr.mxu0 0.0
    %405 = vmatpush1.msra.mxu0 0.0
    %406 = vmatprep.subr.mxu0 0.0
    %407 = vmatpush1.msra.mxu0 0.0
    %408 = vmatprep.subr.mxu0 0.0
    %409 = vmatpush1.msra.mxu0 0.0
    %410 = vmatprep.subr.mxu0 0.0
    %411 = vmatpush1.msra.mxu0 0.0
    %412 = vmatprep.subr.mxu0 0.0
    %413 = vmatpush1.msra.mxu0 0.0
    %414 = vmatprep.subr.mxu0 0.0
    %415 = vmatpush1.msra.mxu0 0.0
    %416 = vmatprep.subr.mxu0 0.0
    %417 = vmatpush1.msra.mxu0 0.0
    %418 = vmatprep.subr.mxu0 0.0
    %419 = vmatpush1.msra.mxu0 0.0
    %420 = vmatprep.mubr.f32.mxu0 0.0
    %421 = vmatmul.mubr.f32.gmra.mrb[0].mxu0 %v279
    %v422 = vpop.f32.mrb[0].mxu0
    %v423 = vadd.f32 0.0, %v422
    %v424 = vpop.f32.mrb[0].mxu0
    %v425 = vadd.f32 0.0, %v424
    %426 = vdwg.mxu0
    %v427 = vadd.f32 %v281, %v352
    %v428 = vadd.f32 %v282, %v354
    %v429 = vadd.f32 %v283, %v423
    %v430 = vadd.f32 %v284, %v425
    %v431 = vmul.f32 %v427, 0.5
    %v432 = vmul.f32 %v428, 0.5
    %v433 = vmul.f32 %v429, 0.5
    %v434 = vtanh.pop %v431
    %v435 = vtanh.pop %v432
    %v436 = vtanh.pop %v433
    %v437 = vmul.f32 %v434, 0.5
    %v438 = vmul.f32 %v435, 0.5
    %v439 = vmul.f32 %v436, 0.5
    %v440 = vadd.f32 %v437, 0.5
    %v441 = vadd.f32 %v438, 0.5
    %v442 = vadd.f32 %v439, 0.5
    %v443 = vtanh.pop %v430
    %v444 = vmul.f32 %v441, %v277
    %v445 = vmul.f32 %v440, %v443
    %v446 = vadd.f32 %v444, %v445
    %v447 = vtanh.pop %v446
    %v448 = vmul.f32 %v442, %v447
    %s449 = scalar_lea.vmem [#allocation4], 64
    %v450 = vld [vmem:[%s449] sm:$0xff]
    %v451 = vld [vmem:[%s449 + $0x8] sm:$0xff]
    %v452 = vld [vmem:[%s449 + $0x10] sm:$0xff]
    %v453 = vld [vmem:[%s449 + $0x18] sm:$0xff]
    %454 = vmatprep.subr.mxu0 %v47
    %455 = vmatpush1.msra.mxu0 %v46
    %456 = vmatprep.subr.mxu0 %v51
    %457 = vmatpush1.msra.mxu0 %v50
    %458 = vmatprep.subr.mxu0 %v55
    %459 = vmatpush1.msra.mxu0 %v54
    %460 = vmatprep.subr.mxu0 %v59
    %461 = vmatpush1.msra.mxu0 %v58
    %462 = vmatprep.subr.mxu0 %v63
    %463 = vmatpush1.msra.mxu0 %v62
    %464 = vmatprep.subr.mxu0 %v67
    %465 = vmatpush1.msra.mxu0 %v66
    %466 = vmatprep.subr.mxu0 %v71
    %467 = vmatpush1.msra.mxu0 %v70
    %468 = vmatprep.subr.mxu0 %v75
    %469 = vmatpush1.msra.mxu0 %v74
    %470 = vmatprep.subr.mxu0 %v79
    %471 = vmatpush1.msra.mxu0 %v78
    %472 = vmatprep.subr.mxu0 %v83
    %473 = vmatpush1.msra.mxu0 %v82
    %474 = vmatprep.subr.mxu0 %v87
    %475 = vmatpush1.msra.mxu0 %v86
    %476 = vmatprep.subr.mxu0 %v91
    %477 = vmatpush1.msra.mxu0 %v90
    %478 = vmatprep.subr.mxu0 %v95
    %479 = vmatpush1.msra.mxu0 %v94
    %480 = vmatprep.subr.mxu0 %v99
    %481 = vmatpush1.msra.mxu0 %v98
    %482 = vmatprep.subr.mxu0 %v103
    %483 = vmatpush1.msra.mxu0 %v102
    %484 = vmatprep.subr.mxu0 %v107
    %485 = vmatpush1.msra.mxu0 %v106
    %486 = vmatprep.subr.mxu0 0.0
    %487 = vmatpush1.msra.mxu0 0.0
    %488 = vmatprep.subr.mxu0 0.0
    %489 = vmatpush1.msra.mxu0 0.0
    %490 = vmatprep.subr.mxu0 0.0
    %491 = vmatpush1.msra.mxu0 0.0
    %492 = vmatprep.subr.mxu0 0.0
    %493 = vmatpush1.msra.mxu0 0.0
    %494 = vmatprep.subr.mxu0 0.0
    %495 = vmatpush1.msra.mxu0 0.0
    %496 = vmatprep.subr.mxu0 0.0
    %497 = vmatpush1.msra.mxu0 0.0
    %498 = vmatprep.subr.mxu0 0.0
    %499 = vmatpush1.msra.mxu0 0.0
    %500 = vmatprep.subr.mxu0 0.0
    %501 = vmatpush1.msra.mxu0 0.0
    %502 = vmatprep.subr.mxu0 0.0
    %503 = vmatpush1.msra.mxu0 0.0
    %504 = vmatprep.subr.mxu0 0.0
    %505 = vmatpush1.msra.mxu0 0.0
    %506 = vmatprep.subr.mxu0 0.0
    %507 = vmatpush1.msra.mxu0 0.0
    %508 = vmatprep.subr.mxu0 0.0
    %509 = vmatpush1.msra.mxu0 0.0
    %510 = vmatprep.subr.mxu0 0.0
    %511 = vmatpush1.msra.mxu0 0.0
    %512 = vmatprep.subr.mxu0 0.0
    %513 = vmatpush1.msra.mxu0 0.0
    %514 = vmatprep.subr.mxu0 0.0
    %515 = vmatpush1.msra.mxu0 0.0
    %516 = vmatprep.subr.mxu0 0.0
    %517 = vmatpush1.msra.mxu0 0.0
    %518 = vmatprep.mubr.f32.mxu0 0.0
    %519 = vmatmul.mubr.f32.gmra.mrb[0].mxu0 %v448
    %v520 = vpop.f32.mrb[0].mxu0
    %v521 = vadd.f32 0.0, %v520
    %v522 = vpop.f32.mrb[0].mxu0
    %v523 = vadd.f32 0.0, %v522
    %524 = vdwg.mxu0
    %525 = vmatprep.subr.mxu0 %v49
    %526 = vmatpush1.msra.mxu0 %v48
    %527 = vmatprep.subr.mxu0 %v53
    %528 = vmatpush1.msra.mxu0 %v52
    %529 = vmatprep.subr.mxu0 %v57
    %530 = vmatpush1.msra.mxu0 %v56
    %531 = vmatprep.subr.mxu0 %v61
    %532 = vmatpush1.msra.mxu0 %v60
    %533 = vmatprep.subr.mxu0 %v65
    %534 = vmatpush1.msra.mxu0 %v64
    %535 = vmatprep.subr.mxu0 %v69
    %536 = vmatpush1.msra.mxu0 %v68
    %537 = vmatprep.subr.mxu0 %v73
    %538 = vmatpush1.msra.mxu0 %v72
    %539 = vmatprep.subr.mxu0 %v77
    %540 = vmatpush1.msra.mxu0 %v76
    %541 = vmatprep.subr.mxu0 %v81
    %542 = vmatpush1.msra.mxu0 %v80
    %543 = vmatprep.subr.mxu0 %v85
    %544 = vmatpush1.msra.mxu0 %v84
    %545 = vmatprep.subr.mxu0 %v89
    %546 = vmatpush1.msra.mxu0 %v88
    %547 = vmatprep.subr.mxu0 %v93
    %548 = vmatpush1.msra.mxu0 %v92
    %549 = vmatprep.subr.mxu0 %v97
    %550 = vmatpush1.msra.mxu0 %v96
    %551 = vmatprep.subr.mxu0 %v101
    %552 = vmatpush1.msra.mxu0 %v100
    %553 = vmatprep.subr.mxu0 %v105
    %554 = vmatpush1.msra.mxu0 %v104
    %555 = vmatprep.subr.mxu0 %v109
    %556 = vmatpush1.msra.mxu0 %v108
    %557 = vmatprep.subr.mxu0 0.0
    %558 = vmatpush1.msra.mxu0 0.0
    %559 = vmatprep.subr.mxu0 0.0
    %560 = vmatpush1.msra.mxu0 0.0
    %561 = vmatprep.subr.mxu0 0.0
    %562 = vmatpush1.msra.mxu0 0.0
    %563 = vmatprep.subr.mxu0 0.0
    %564 = vmatpush1.msra.mxu0 0.0
    %565 = vmatprep.subr.mxu0 0.0
    %566 = vmatpush1.msra.mxu0 0.0
    %567 = vmatprep.subr.mxu0 0.0
    %568 = vmatpush1.msra.mxu0 0.0
    %569 = vmatprep.subr.mxu0 0.0
    %570 = vmatpush1.msra.mxu0 0.0
    %571 = vmatprep.subr.mxu0 0.0
    %572 = vmatpush1.msra.mxu0 0.0
    %573 = vmatprep.subr.mxu0 0.0
    %574 = vmatpush1.msra.mxu0 0.0
    %575 = vmatprep.subr.mxu0 0.0
    %576 = vmatpush1.msra.mxu0 0.0
    %577 = vmatprep.subr.mxu0 0.0
    %578 = vmatpush1.msra.mxu0 0.0
    %579 = vmatprep.subr.mxu0 0.0
    %580 = vmatpush1.msra.mxu0 0.0
    %581 = vmatprep.subr.mxu0 0.0
    %582 = vmatpush1.msra.mxu0 0.0
    %583 = vmatprep.subr.mxu0 0.0
    %584 = vmatpush1.msra.mxu0 0.0
    %585 = vmatprep.subr.mxu0 0.0
    %586 = vmatpush1.msra.mxu0 0.0
    %587 = vmatprep.subr.mxu0 0.0
    %588 = vmatpush1.msra.mxu0 0.0
    %589 = vmatprep.mubr.f32.mxu0 0.0
    %590 = vmatmul.mubr.f32.gmra.mrb[0].mxu0 %v448
    %v591 = vpop.f32.mrb[0].mxu0
    %v592 = vadd.f32 0.0, %v591
    %v593 = vpop.f32.mrb[0].mxu0
    %v594 = vadd.f32 0.0, %v593
    %595 = vdwg.mxu0
    %v596 = vadd.f32 %v450, %v521
    %v597 = vadd.f32 %v451, %v523
    %v598 = vadd.f32 %v452, %v592
    %v599 = vadd.f32 %v453, %v594
    %v600 = vmul.f32 %v596, 0.5
    %v601 = vmul.f32 %v597, 0.5
    %v602 = vmul.f32 %v598, 0.5
    %v603 = vtanh.pop %v600
    %v604 = vtanh.pop %v601
    %v605 = vtanh.pop %v602
    %v606 = vmul.f32 %v603, 0.5
    %v607 = vmul.f32 %v604, 0.5
    %v608 = vmul.f32 %v605, 0.5
    %v609 = vadd.f32 %v606, 0.5
    %v610 = vadd.f32 %v607, 0.5
    %v611 = vadd.f32 %v608, 0.5
    %v612 = vtanh.pop %v599
    %v613 = vmul.f32 %v610, %v446
    %v614 = vmul.f32 %v609, %v612
    %v615 = vadd.f32 %v613, %v614
    %v616 = vtanh.pop %v615
    %v617 = vmul.f32 %v611, %v616
    %s618 = scalar_lea.vmem [#allocation4], 96
    %v619 = vld [vmem:[%s618] sm:$0xff]
    %v620 = vld [vmem:[%s618 + $0x8] sm:$0xff]
    %v621 = vld [vmem:[%s618 + $0x10] sm:$0xff]
    %v622 = vld [vmem:[%s618 + $0x18] sm:$0xff]
    %623 = vmatprep.subr.mxu0 %v47
    %624 = vmatpush1.msra.mxu0 %v46
    %625 = vmatprep.subr.mxu0 %v51
    %626 = vmatpush1.msra.mxu0 %v50
    %627 = vmatprep.subr.mxu0 %v55
    %628 = vmatpush1.msra.mxu0 %v54
    %629 = vmatprep.subr.mxu0 %v59
    %630 = vmatpush1.msra.mxu0 %v58
    %631 = vmatprep.subr.mxu0 %v63
    %632 = vmatpush1.msra.mxu0 %v62
    %633 = vmatprep.subr.mxu0 %v67
    %634 = vmatpush1.msra.mxu0 %v66
    %635 = vmatprep.subr.mxu0 %v71
    %636 = vmatpush1.msra.mxu0 %v70
    %637 = vmatprep.subr.mxu0 %v75
    %638 = vmatpush1.msra.mxu0 %v74
    %639 = vmatprep.subr.mxu0 %v79
    %640 = vmatpush1.msra.mxu0 %v78
    %641 = vmatprep.subr.mxu0 %v83
    %642 = vmatpush1.msra.mxu0 %v82
    %643 = vmatprep.subr.mxu0 %v87
    %644 = vmatpush1.msra.mxu0 %v86
    %645 = vmatprep.subr.mxu0 %v91
    %646 = vmatpush1.msra.mxu0 %v90
    %647 = vmatprep.subr.mxu0 %v95
    %648 = vmatpush1.msra.mxu0 %v94
    %649 = vmatprep.subr.mxu0 %v99
    %650 = vmatpush1.msra.mxu0 %v98
    %651 = vmatprep.subr.mxu0 %v103
    %652 = vmatpush1.msra.mxu0 %v102
    %653 = vmatprep.subr.mxu0 %v107
    %654 = vmatpush1.msra.mxu0 %v106
    %655 = vmatprep.subr.mxu0 0.0
    %656 = vmatpush1.msra.mxu0 0.0
    %657 = vmatprep.subr.mxu0 0.0
    %658 = vmatpush1.msra.mxu0 0.0
    %659 = vmatprep.subr.mxu0 0.0
    %660 = vmatpush1.msra.mxu0 0.0
    %661 = vmatprep.subr.mxu0 0.0
    %662 = vmatpush1.msra.mxu0 0.0
    %663 = vmatprep.subr.mxu0 0.0
    %664 = vmatpush1.msra.mxu0 0.0
    %665 = vmatprep.subr.mxu0 0.0
    %666 = vmatpush1.msra.mxu0 0.0
    %667 = vmatprep.subr.mxu0 0.0
    %668 = vmatpush1.msra.mxu0 0.0
    %669 = vmatprep.subr.mxu0 0.0
    %670 = vmatpush1.msra.mxu0 0.0
    %671 = vmatprep.subr.mxu0 0.0
    %672 = vmatpush1.msra.mxu0 0.0
    %673 = vmatprep.subr.mxu0 0.0
    %674 = vmatpush1.msra.mxu0 0.0
    %675 = vmatprep.subr.mxu0 0.0
    %676 = vmatpush1.msra.mxu0 0.0
    %677 = vmatprep.subr.mxu0 0.0
    %678 = vmatpush1.msra.mxu0 0.0
    %679 = vmatprep.subr.mxu0 0.0
    %680 = vmatpush1.msra.mxu0 0.0
    %681 = vmatprep.subr.mxu0 0.0
    %682 = vmatpush1.msra.mxu0 0.0
    %683 = vmatprep.subr.mxu0 0.0
    %684 = vmatpush1.msra.mxu0 0.0
    %685 = vmatprep.subr.mxu0 0.0
    %686 = vmatpush1.msra.mxu0 0.0
    %687 = vmatprep.mubr.f32.mxu0 0.0
    %688 = vmatmul.mubr.f32.gmra.mrb[0].mxu0 %v617
    %v689 = vpop.f32.mrb[0].mxu0
    %v690 = vadd.f32 0.0, %v689
    %v691 = vpop.f32.mrb[0].mxu0
    %v692 = vadd.f32 0.0, %v691
    %693 = vdwg.mxu0
    %694 = vmatprep.subr.mxu0 %v49
    %695 = vmatpush1.msra.mxu0 %v48
    %696 = vmatprep.subr.mxu0 %v53
    %697 = vmatpush1.msra.mxu0 %v52
    %698 = vmatprep.subr.mxu0 %v57
    %699 = vmatpush1.msra.mxu0 %v56
    %700 = vmatprep.subr.mxu0 %v61
    %701 = vmatpush1.msra.mxu0 %v60
    %702 = vmatprep.subr.mxu0 %v65
    %703 = vmatpush1.msra.mxu0 %v64
    %704 = vmatprep.subr.mxu0 %v69
    %705 = vmatpush1.msra.mxu0 %v68
    %706 = vmatprep.subr.mxu0 %v73
    %707 = vmatpush1.msra.mxu0 %v72
    %708 = vmatprep.subr.mxu0 %v77
    %709 = vmatpush1.msra.mxu0 %v76
    %710 = vmatprep.subr.mxu0 %v81
    %711 = vmatpush1.msra.mxu0 %v80
    %712 = vmatprep.subr.mxu0 %v85
    %713 = vmatpush1.msra.mxu0 %v84
    %714 = vmatprep.subr.mxu0 %v89
    %715 = vmatpush1.msra.mxu0 %v88
    %716 = vmatprep.subr.mxu0 %v93
    %717 = vmatpush1.msra.mxu0 %v92
    %718 = vmatprep.subr.mxu0 %v97
    %719 = vmatpush1.msra.mxu0 %v96
    %720 = vmatprep.subr.mxu0 %v101
    %721 = vmatpush1.msra.mxu0 %v100
    %722 = vmatprep.subr.mxu0 %v105
    %723 = vmatpush1.msra.mxu0 %v104
    %724 = vmatprep.subr.mxu0 %v109
    %725 = vmatpush1.msra.mxu0 %v108
    %726 = vmatprep.subr.mxu0 0.0
    %727 = vmatpush1.msra.mxu0 0.0
    %728 = vmatprep.subr.mxu0 0.0
    %729 = vmatpush1.msra.mxu0 0.0
    %730 = vmatprep.subr.mxu0 0.0
    %731 = vmatpush1.msra.mxu0 0.0
    %732 = vmatprep.subr.mxu0 0.0
    %733 = vmatpush1.msra.mxu0 0.0
    %734 = vmatprep.subr.mxu0 0.0
    %735 = vmatpush1.msra.mxu0 0.0
    %736 = vmatprep.subr.mxu0 0.0
    %737 = vmatpush1.msra.mxu0 0.0
    %738 = vmatprep.subr.mxu0 0.0
    %739 = vmatpush1.msra.mxu0 0.0
    %740 = vmatprep.subr.mxu0 0.0
    %741 = vmatpush1.msra.mxu0 0.0
    %742 = vmatprep.subr.mxu0 0.0
    %743 = vmatpush1.msra.mxu0 0.0
    %744 = vmatprep.subr.mxu0 0.0
    %745 = vmatpush1.msra.mxu0 0.0
    %746 = vmatprep.subr.mxu0 0.0
    %747 = vmatpush1.msra.mxu0 0.0
    %748 = vmatprep.subr.mxu0 0.0
    %749 = vmatpush1.msra.mxu0 0.0
    %750 = vmatprep.subr.mxu0 0.0
    %751 = vmatpush1.msra.mxu0 0.0
    %752 = vmatprep.subr.mxu0 0.0
    %753 = vmatpush1.msra.mxu0 0.0
    %754 = vmatprep.subr.mxu0 0.0
    %755 = vmatpush1.msra.mxu0 0.0
    %756 = vmatprep.subr.mxu0 0.0
    %757 = vmatpush1.msra.mxu0 0.0
    %758 = vmatprep.mubr.f32.mxu0 0.0
    %759 = vmatmul.mubr.f32.gmra.mrb[0].mxu0 %v617
    %v760 = vpop.f32.mrb[0].mxu0
    %v761 = vadd.f32 0.0, %v760
    %v762 = vpop.f32.mrb[0].mxu0
    %v763 = vadd.f32 0.0, %v762
    %764 = vdwg.mxu0
    %v765 = vadd.f32 %v619, %v690
    %v766 = vadd.f32 %v620, %v692
    %v767 = vadd.f32 %v621, %v761
    %v768 = vadd.f32 %v622, %v763
    %v769 = vmul.f32 %v765, 0.5
    %v770 = vmul.f32 %v766, 0.5
    %v771 = vmul.f32 %v767, 0.5
    %v772 = vtanh.pop %v769
    %v773 = vtanh.pop %v770
    %v774 = vtanh.pop %v771
    %v775 = vmul.f32 %v772, 0.5
    %v776 = vmul.f32 %v773, 0.5
    %v777 = vmul.f32 %v774, 0.5
    %v778 = vadd.f32 %v775, 0.5
    %v779 = vadd.f32 %v776, 0.5
    %v780 = vadd.f32 %v777, 0.5
    %v781 = vtanh.pop %v768
    %v782 = vmul.f32 %v779, %v615
    %v783 = vmul.f32 %v778, %v781
    %v784 = vadd.f32 %v782, %v783
    %v785 = vtanh.pop %v784
    %v786 = vmul.f32 %v780, %v785
    %s787 = scalar_lea.vmem [#allocation4], 128
    %v788 = vld [vmem:[%s787] sm:$0xff]
    %v789 = vld [vmem:[%s787 + $0x8] sm:$0xff]
    %v790 = vld [vmem:[%s787 + $0x10] sm:$0xff]
    %v791 = vld [vmem:[%s787 + $0x18] sm:$0xff]
    %792 = vmatprep.subr.mxu0 %v47
    %793 = vmatpush1.msra.mxu0 %v46
    %794 = vmatprep.subr.mxu0 %v51
    %795 = vmatpush1.msra.mxu0 %v50
    %796 = vmatprep.subr.mxu0 %v55
    %797 = vmatpush1.msra.mxu0 %v54
    %798 = vmatprep.subr.mxu0 %v59
    %799 = vmatpush1.msra.mxu0 %v58
    %800 = vmatprep.subr.mxu0 %v63
    %801 = vmatpush1.msra.mxu0 %v62
    %802 = vmatprep.subr.mxu0 %v67
    %803 = vmatpush1.msra.mxu0 %v66
    %804 = vmatprep.subr.mxu0 %v71
    %805 = vmatpush1.msra.mxu0 %v70
    %806 = vmatprep.subr.mxu0 %v75
    %807 = vmatpush1.msra.mxu0 %v74
    %808 = vmatprep.subr.mxu0 %v79
    %809 = vmatpush1.msra.mxu0 %v78
    %810 = vmatprep.subr.mxu0 %v83
    %811 = vmatpush1.msra.mxu0 %v82
    %812 = vmatprep.subr.mxu0 %v87
    %813 = vmatpush1.msra.mxu0 %v86
    %814 = vmatprep.subr.mxu0 %v91
    %815 = vmatpush1.msra.mxu0 %v90
    %816 = vmatprep.subr.mxu0 %v95
    %817 = vmatpush1.msra.mxu0 %v94
    %818 = vmatprep.subr.mxu0 %v99
    %819 = vmatpush1.msra.mxu0 %v98
    %820 = vmatprep.subr.mxu0 %v103
    %821 = vmatpush1.msra.mxu0 %v102
    %822 = vmatprep.subr.mxu0 %v107
    %823 = vmatpush1.msra.mxu0 %v106
    %824 = vmatprep.subr.mxu0 0.0
    %825 = vmatpush1.msra.mxu0 0.0
    %826 = vmatprep.subr.mxu0 0.0
    %827 = vmatpush1.msra.mxu0 0.0
    %828 = vmatprep.subr.mxu0 0.0
    %829 = vmatpush1.msra.mxu0 0.0
    %830 = vmatprep.subr.mxu0 0.0
    %831 = vmatpush1.msra.mxu0 0.0
    %832 = vmatprep.subr.mxu0 0.0
    %833 = vmatpush1.msra.mxu0 0.0
    %834 = vmatprep.subr.mxu0 0.0
    %835 = vmatpush1.msra.mxu0 0.0
    %836 = vmatprep.subr.mxu0 0.0
    %837 = vmatpush1.msra.mxu0 0.0
    %838 = vmatprep.subr.mxu0 0.0
    %839 = vmatpush1.msra.mxu0 0.0
    %840 = vmatprep.subr.mxu0 0.0
    %841 = vmatpush1.msra.mxu0 0.0
    %842 = vmatprep.subr.mxu0 0.0
    %843 = vmatpush1.msra.mxu0 0.0
    %844 = vmatprep.subr.mxu0 0.0
    %845 = vmatpush1.msra.mxu0 0.0
    %846 = vmatprep.subr.mxu0 0.0
    %847 = vmatpush1.msra.mxu0 0.0
    %848 = vmatprep.subr.mxu0 0.0
    %849 = vmatpush1.msra.mxu0 0.0
    %850 = vmatprep.subr.mxu0 0.0
    %851 = vmatpush1.msra.mxu0 0.0
    %852 = vmatprep.subr.mxu0 0.0
    %853 = vmatpush1.msra.mxu0 0.0
    %854 = vmatprep.subr.mxu0 0.0
    %855 = vmatpush1.msra.mxu0 0.0
    %856 = vmatprep.mubr.f32.mxu0 0.0
    %857 = vmatmul.mubr.f32.gmra.mrb[0].mxu0 %v786
    %v858 = vpop.f32.mrb[0].mxu0
    %v859 = vadd.f32 0.0, %v858
    %v860 = vpop.f32.mrb[0].mxu0
    %v861 = vadd.f32 0.0, %v860
    %862 = vdwg.mxu0
    %863 = vmatprep.subr.mxu0 %v49
    %864 = vmatpush1.msra.mxu0 %v48
    %865 = vmatprep.subr.mxu0 %v53
    %866 = vmatpush1.msra.mxu0 %v52
    %867 = vmatprep.subr.mxu0 %v57
    %868 = vmatpush1.msra.mxu0 %v56
    %869 = vmatprep.subr.mxu0 %v61
    %870 = vmatpush1.msra.mxu0 %v60
    %871 = vmatprep.subr.mxu0 %v65
    %872 = vmatpush1.msra.mxu0 %v64
    %873 = vmatprep.subr.mxu0 %v69
    %874 = vmatpush1.msra.mxu0 %v68
    %875 = vmatprep.subr.mxu0 %v73
    %876 = vmatpush1.msra.mxu0 %v72
    %877 = vmatprep.subr.mxu0 %v77
    %878 = vmatpush1.msra.mxu0 %v76
    %879 = vmatprep.subr.mxu0 %v81
    %880 = vmatpush1.msra.mxu0 %v80
    %881 = vmatprep.subr.mxu0 %v85
    %882 = vmatpush1.msra.mxu0 %v84
    %883 = vmatprep.subr.mxu0 %v89
    %884 = vmatpush1.msra.mxu0 %v88
    %885 = vmatprep.subr.mxu0 %v93
    %886 = vmatpush1.msra.mxu0 %v92
    %887 = vmatprep.subr.mxu0 %v97
    %888 = vmatpush1.msra.mxu0 %v96
    %889 = vmatprep.subr.mxu0 %v101
    %890 = vmatpush1.msra.mxu0 %v100
    %891 = vmatprep.subr.mxu0 %v105
    %892 = vmatpush1.msra.mxu0 %v104
    %893 = vmatprep.subr.mxu0 %v109
    %894 = vmatpush1.msra.mxu0 %v108
    %895 = vmatprep.subr.mxu0 0.0
    %896 = vmatpush1.msra.mxu0 0.0
    %897 = vmatprep.subr.mxu0 0.0
    %898 = vmatpush1.msra.mxu0 0.0
    %899 = vmatprep.subr.mxu0 0.0
    %900 = vmatpush1.msra.mxu0 0.0
    %901 = vmatprep.subr.mxu0 0.0
    %902 = vmatpush1.msra.mxu0 0.0
    %903 = vmatprep.subr.mxu0 0.0
    %904 = vmatpush1.msra.mxu0 0.0
    %905 = vmatprep.subr.mxu0 0.0
    %906 = vmatpush1.msra.mxu0 0.0
    %907 = vmatprep.subr.mxu0 0.0
    %908 = vmatpush1.msra.mxu0 0.0
    %909 = vmatprep.subr.mxu0 0.0
    %910 = vmatpush1.msra.mxu0 0.0
    %911 = vmatprep.subr.mxu0 0.0
    %912 = vmatpush1.msra.mxu0 0.0
    %913 = vmatprep.subr.mxu0 0.0
    %914 = vmatpush1.msra.mxu0 0.0
    %915 = vmatprep.subr.mxu0 0.0
    %916 = vmatpush1.msra.mxu0 0.0
    %917 = vmatprep.subr.mxu0 0.0
    %918 = vmatpush1.msra.mxu0 0.0
    %919 = vmatprep.subr.mxu0 0.0
    %920 = vmatpush1.msra.mxu0 0.0
    %921 = vmatprep.subr.mxu0 0.0
    %922 = vmatpush1.msra.mxu0 0.0
    %923 = vmatprep.subr.mxu0 0.0
    %924 = vmatpush1.msra.mxu0 0.0
    %925 = vmatprep.subr.mxu0 0.0
    %926 = vmatpush1.msra.mxu0 0.0
    %927 = vmatprep.mubr.f32.mxu0 0.0
    %928 = vmatmul.mubr.f32.gmra.mrb[0].mxu0 %v786
    %v929 = vpop.f32.mrb[0].mxu0
    %v930 = vadd.f32 0.0, %v929
    %v931 = vpop.f32.mrb[0].mxu0
    %v932 = vadd.f32 0.0, %v931
    %933 = vdwg.mxu0
    %v934 = vadd.f32 %v788, %v859
    %v935 = vadd.f32 %v789, %v861
    %v936 = vadd.f32 %v790, %v930
    %v937 = vadd.f32 %v791, %v932
    %v938 = vmul.f32 %v934, 0.5
    %v939 = vmul.f32 %v935, 0.5
    %v940 = vmul.f32 %v936, 0.5
    %v941 = vtanh.pop %v938
    %v942 = vtanh.pop %v939
    %v943 = vtanh.pop %v940
    %v944 = vmul.f32 %v941, 0.5
    %v945 = vmul.f32 %v942, 0.5
    %v946 = vmul.f32 %v943, 0.5
    %v947 = vadd.f32 %v944, 0.5
    %v948 = vadd.f32 %v945, 0.5
    %v949 = vadd.f32 %v946, 0.5
    %v950 = vtanh.pop %v937
    %v951 = vmul.f32 %v948, %v784
    %v952 = vmul.f32 %v947, %v950
    %v953 = vadd.f32 %v951, %v952
    %v954 = vtanh.pop %v953
    %v955 = vmul.f32 %v949, %v954
    %s956 = scalar_lea.vmem [#allocation4], 160
    %v957 = vld [vmem:[%s956] sm:$0xff]
    %v958 = vld [vmem:[%s956 + $0x8] sm:$0xff]
    %v959 = vld [vmem:[%s956 + $0x10] sm:$0xff]
    %v960 = vld [vmem:[%s956 + $0x18] sm:$0xff]
    %961 = vmatprep.subr.mxu0 %v47
    %962 = vmatpush1.msra.mxu0 %v46
    %963 = vmatprep.subr.mxu0 %v51
    %964 = vmatpush1.msra.mxu0 %v50
    %965 = vmatprep.subr.mxu0 %v55
    %966 = vmatpush1.msra.mxu0 %v54
    %967 = vmatprep.subr.mxu0 %v59
    %968 = vmatpush1.msra.mxu0 %v58
    %969 = vmatprep.subr.mxu0 %v63
    %970 = vmatpush1.msra.mxu0 %v62
    %971 = vmatprep.subr.mxu0 %v67
    %972 = vmatpush1.msra.mxu0 %v66
    %973 = vmatprep.subr.mxu0 %v71
    %974 = vmatpush1.msra.mxu0 %v70
    %975 = vmatprep.subr.mxu0 %v75
    %976 = vmatpush1.msra.mxu0 %v74
    %977 = vmatprep.subr.mxu0 %v79
    %978 = vmatpush1.msra.mxu0 %v78
    %979 = vmatprep.subr.mxu0 %v83
    %980 = vmatpush1.msra.mxu0 %v82
    %981 = vmatprep.subr.mxu0 %v87
    %982 = vmatpush1.msra.mxu0 %v86
    %983 = vmatprep.subr.mxu0 %v91
    %984 = vmatpush1.msra.mxu0 %v90
    %985 = vmatprep.subr.mxu0 %v95
    %986 = vmatpush1.msra.mxu0 %v94
    %987 = vmatprep.subr.mxu0 %v99
    %988 = vmatpush1.msra.mxu0 %v98
    %989 = vmatprep.subr.mxu0 %v103
    %990 = vmatpush1.msra.mxu0 %v102
    %991 = vmatprep.subr.mxu0 %v107
    %992 = vmatpush1.msra.mxu0 %v106
    %993 = vmatprep.subr.mxu0 0.0
    %994 = vmatpush1.msra.mxu0 0.0
    %995 = vmatprep.subr.mxu0 0.0
    %996 = vmatpush1.msra.mxu0 0.0
    %997 = vmatprep.subr.mxu0 0.0
    %998 = vmatpush1.msra.mxu0 0.0
    %999 = vmatprep.subr.mxu0 0.0
    %1000 = vmatpush1.msra.mxu0 0.0
    %1001 = vmatprep.subr.mxu0 0.0
    %1002 = vmatpush1.msra.mxu0 0.0
    %1003 = vmatprep.subr.mxu0 0.0
    %1004 = vmatpush1.msra.mxu0 0.0
    %1005 = vmatprep.subr.mxu0 0.0
    %1006 = vmatpush1.msra.mxu0 0.0
    %1007 = vmatprep.subr.mxu0 0.0
    %1008 = vmatpush1.msra.mxu0 0.0
    %1009 = vmatprep.subr.mxu0 0.0
    %1010 = vmatpush1.msra.mxu0 0.0
    %1011 = vmatprep.subr.mxu0 0.0
    %1012 = vmatpush1.msra.mxu0 0.0
    %1013 = vmatprep.subr.mxu0 0.0
    %1014 = vmatpush1.msra.mxu0 0.0
    %1015 = vmatprep.subr.mxu0 0.0
    %1016 = vmatpush1.msra.mxu0 0.0
    %1017 = vmatprep.subr.mxu0 0.0
    %1018 = vmatpush1.msra.mxu0 0.0
    %1019 = vmatprep.subr.mxu0 0.0
    %1020 = vmatpush1.msra.mxu0 0.0
    %1021 = vmatprep.subr.mxu0 0.0
    %1022 = vmatpush1.msra.mxu0 0.0
    %1023 = vmatprep.subr.mxu0 0.0
    %1024 = vmatpush1.msra.mxu0 0.0
    %1025 = vmatprep.mubr.f32.mxu0 0.0
    %1026 = vmatmul.mubr.f32.gmra.mrb[0].mxu0 %v955
    %v1027 = vpop.f32.mrb[0].mxu0
    %v1028 = vadd.f32 0.0, %v1027
    %v1029 = vpop.f32.mrb[0].mxu0
    %v1030 = vadd.f32 0.0, %v1029
    %1031 = vdwg.mxu0
    %1032 = vmatprep.subr.mxu0 %v49
    %1033 = vmatpush1.msra.mxu0 %v48
    %1034 = vmatprep.subr.mxu0 %v53
    %1035 = vmatpush1.msra.mxu0 %v52
    %1036 = vmatprep.subr.mxu0 %v57
    %1037 = vmatpush1.msra.mxu0 %v56
    %1038 = vmatprep.subr.mxu0 %v61
    %1039 = vmatpush1.msra.mxu0 %v60
    %1040 = vmatprep.subr.mxu0 %v65
    %1041 = vmatpush1.msra.mxu0 %v64
    %1042 = vmatprep.subr.mxu0 %v69
    %1043 = vmatpush1.msra.mxu0 %v68
    %1044 = vmatprep.subr.mxu0 %v73
    %1045 = vmatpush1.msra.mxu0 %v72
    %1046 = vmatprep.subr.mxu0 %v77
    %1047 = vmatpush1.msra.mxu0 %v76
    %1048 = vmatprep.subr.mxu0 %v81
    %1049 = vmatpush1.msra.mxu0 %v80
    %1050 = vmatprep.subr.mxu0 %v85
    %1051 = vmatpush1.msra.mxu0 %v84
    %1052 = vmatprep.subr.mxu0 %v89
    %1053 = vmatpush1.msra.mxu0 %v88
    %1054 = vmatprep.subr.mxu0 %v93
    %1055 = vmatpush1.msra.mxu0 %v92
    %1056 = vmatprep.subr.mxu0 %v97
    %1057 = vmatpush1.msra.mxu0 %v96
    %1058 = vmatprep.subr.mxu0 %v101
    %1059 = vmatpush1.msra.mxu0 %v100
    %1060 = vmatprep.subr.mxu0 %v105
    %1061 = vmatpush1.msra.mxu0 %v104
    %1062 = vmatprep.subr.mxu0 %v109
    %1063 = vmatpush1.msra.mxu0 %v108
    %1064 = vmatprep.subr.mxu0 0.0
    %1065 = vmatpush1.msra.mxu0 0.0
    %1066 = vmatprep.subr.mxu0 0.0
    %1067 = vmatpush1.msra.mxu0 0.0
    %1068 = vmatprep.subr.mxu0 0.0
    %1069 = vmatpush1.msra.mxu0 0.0
    %1070 = vmatprep.subr.mxu0 0.0
    %1071 = vmatpush1.msra.mxu0 0.0
    %1072 = vmatprep.subr.mxu0 0.0
    %1073 = vmatpush1.msra.mxu0 0.0
    %1074 = vmatprep.subr.mxu0 0.0
    %1075 = vmatpush1.msra.mxu0 0.0
    %1076 = vmatprep.subr.mxu0 0.0
    %1077 = vmatpush1.msra.mxu0 0.0
    %1078 = vmatprep.subr.mxu0 0.0
    %1079 = vmatpush1.msra.mxu0 0.0
    %1080 = vmatprep.subr.mxu0 0.0
    %1081 = vmatpush1.msra.mxu0 0.0
    %1082 = vmatprep.subr.mxu0 0.0
    %1083 = vmatpush1.msra.mxu0 0.0
    %1084 = vmatprep.subr.mxu0 0.0
    %1085 = vmatpush1.msra.mxu0 0.0
    %1086 = vmatprep.subr.mxu0 0.0
    %1087 = vmatpush1.msra.mxu0 0.0
    %1088 = vmatprep.subr.mxu0 0.0
    %1089 = vmatpush1.msra.mxu0 0.0
    %1090 = vmatprep.subr.mxu0 0.0
    %1091 = vmatpush1.msra.mxu0 0.0
    %1092 = vmatprep.subr.mxu0 0.0
    %1093 = vmatpush1.msra.mxu0 0.0
    %1094 = vmatprep.subr.mxu0 0.0
    %1095 = vmatpush1.msra.mxu0 0.0
    %1096 = vmatprep.mubr.f32.mxu0 0.0
    %1097 = vmatmul.mubr.f32.gmra.mrb[0].mxu0 %v955
    %v1098 = vpop.f32.mrb[0].mxu0
    %v1099 = vadd.f32 0.0, %v1098
    %v1100 = vpop.f32.mrb[0].mxu0
    %v1101 = vadd.f32 0.0, %v1100
    %1102 = vdwg.mxu0
    %v1103 = vadd.f32 %v957, %v1028
    %v1104 = vadd.f32 %v958, %v1030
    %v1105 = vadd.f32 %v959, %v1099
    %v1106 = vadd.f32 %v960, %v1101
    %v1107 = vmul.f32 %v1103, 0.5
    %v1108 = vmul.f32 %v1104, 0.5
    %v1109 = vmul.f32 %v1105, 0.5
    %v1110 = vtanh.pop %v1107
    %v1111 = vtanh.pop %v1108
    %v1112 = vtanh.pop %v1109
    %v1113 = vmul.f32 %v1110, 0.5
    %v1114 = vmul.f32 %v1111, 0.5
    %v1115 = vmul.f32 %v1112, 0.5
    %v1116 = vadd.f32 %v1113, 0.5
    %v1117 = vadd.f32 %v1114, 0.5
    %v1118 = vadd.f32 %v1115, 0.5
    %v1119 = vtanh.pop %v1106
    %v1120 = vmul.f32 %v1117, %v953
    %v1121 = vmul.f32 %v1116, %v1119
    %v1122 = vadd.f32 %v1120, %v1121
    %v1123 = vtanh.pop %v1122
    %v1124 = vmul.f32 %v1118, %v1123
    %s1125 = scalar_lea.vmem [#allocation4], 192
    %v1126 = vld [vmem:[%s1125] sm:$0xff]
    %v1127 = vld [vmem:[%s1125 + $0x8] sm:$0xff]
    %v1128 = vld [vmem:[%s1125 + $0x10] sm:$0xff]
    %v1129 = vld [vmem:[%s1125 + $0x18] sm:$0xff]
    %1130 = vmatprep.subr.mxu0 %v47
    %1131 = vmatpush1.msra.mxu0 %v46
    %1132 = vmatprep.subr.mxu0 %v51
    %1133 = vmatpush1.msra.mxu0 %v50
    %1134 = vmatprep.subr.mxu0 %v55
    %1135 = vmatpush1.msra.mxu0 %v54
    %1136 = vmatprep.subr.mxu0 %v59
    %1137 = vmatpush1.msra.mxu0 %v58
    %1138 = vmatprep.subr.mxu0 %v63
    %1139 = vmatpush1.msra.mxu0 %v62
    %1140 = vmatprep.subr.mxu0 %v67
    %1141 = vmatpush1.msra.mxu0 %v66
    %1142 = vmatprep.subr.mxu0 %v71
    %1143 = vmatpush1.msra.mxu0 %v70
    %1144 = vmatprep.subr.mxu0 %v75
    %1145 = vmatpush1.msra.mxu0 %v74
    %1146 = vmatprep.subr.mxu0 %v79
    %1147 = vmatpush1.msra.mxu0 %v78
    %1148 = vmatprep.subr.mxu0 %v83
    %1149 = vmatpush1.msra.mxu0 %v82
    %1150 = vmatprep.subr.mxu0 %v87
    %1151 = vmatpush1.msra.mxu0 %v86
    %1152 = vmatprep.subr.mxu0 %v91
    %1153 = vmatpush1.msra.mxu0 %v90
    %1154 = vmatprep.subr.mxu0 %v95
    %1155 = vmatpush1.msra.mxu0 %v94
    %1156 = vmatprep.subr.mxu0 %v99
    %1157 = vmatpush1.msra.mxu0 %v98
    %1158 = vmatprep.subr.mxu0 %v103
    %1159 = vmatpush1.msra.mxu0 %v102
    %1160 = vmatprep.subr.mxu0 %v107
    %1161 = vmatpush1.msra.mxu0 %v106
    %1162 = vmatprep.subr.mxu0 0.0
    %1163 = vmatpush1.msra.mxu0 0.0
    %1164 = vmatprep.subr.mxu0 0.0
    %1165 = vmatpush1.msra.mxu0 0.0
    %1166 = vmatprep.subr.mxu0 0.0
    %1167 = vmatpush1.msra.mxu0 0.0
    %1168 = vmatprep.subr.mxu0 0.0
    %1169 = vmatpush1.msra.mxu0 0.0
    %1170 = vmatprep.subr.mxu0 0.0
    %1171 = vmatpush1.msra.mxu0 0.0
    %1172 = vmatprep.subr.mxu0 0.0
    %1173 = vmatpush1.msra.mxu0 0.0
    %1174 = vmatprep.subr.mxu0 0.0
    %1175 = vmatpush1.msra.mxu0 0.0
    %1176 = vmatprep.subr.mxu0 0.0
    %1177 = vmatpush1.msra.mxu0 0.0
    %1178 = vmatprep.subr.mxu0 0.0
    %1179 = vmatpush1.msra.mxu0 0.0
    %1180 = vmatprep.subr.mxu0 0.0
    %1181 = vmatpush1.msra.mxu0 0.0
    %1182 = vmatprep.subr.mxu0 0.0
    %1183 = vmatpush1.msra.mxu0 0.0
    %1184 = vmatprep.subr.mxu0 0.0
    %1185 = vmatpush1.msra.mxu0 0.0
    %1186 = vmatprep.subr.mxu0 0.0
    %1187 = vmatpush1.msra.mxu0 0.0
    %1188 = vmatprep.subr.mxu0 0.0
    %1189 = vmatpush1.msra.mxu0 0.0
    %1190 = vmatprep.subr.mxu0 0.0
    %1191 = vmatpush1.msra.mxu0 0.0
    %1192 = vmatprep.subr.mxu0 0.0
    %1193 = vmatpush1.msra.mxu0 0.0
    %1194 = vmatprep.mubr.f32.mxu0 0.0
    %1195 = vmatmul.mubr.f32.gmra.mrb[0].mxu0 %v1124
    %v1196 = vpop.f32.mrb[0].mxu0
    %v1197 = vadd.f32 0.0, %v1196
    %v1198 = vpop.f32.mrb[0].mxu0
    %v1199 = vadd.f32 0.0, %v1198
    %1200 = vdwg.mxu0
    %1201 = vmatprep.subr.mxu0 %v49
    %1202 = vmatpush1.msra.mxu0 %v48
    %1203 = vmatprep.subr.mxu0 %v53
    %1204 = vmatpush1.msra.mxu0 %v52
    %1205 = vmatprep.subr.mxu0 %v57
    %1206 = vmatpush1.msra.mxu0 %v56
    %1207 = vmatprep.subr.mxu0 %v61
    %1208 = vmatpush1.msra.mxu0 %v60
    %1209 = vmatprep.subr.mxu0 %v65
    %1210 = vmatpush1.msra.mxu0 %v64
    %1211 = vmatprep.subr.mxu0 %v69
    %1212 = vmatpush1.msra.mxu0 %v68
    %1213 = vmatprep.subr.mxu0 %v73
    %1214 = vmatpush1.msra.mxu0 %v72
    %1215 = vmatprep.subr.mxu0 %v77
    %1216 = vmatpush1.msra.mxu0 %v76
    %1217 = vmatprep.subr.mxu0 %v81
    %1218 = vmatpush1.msra.mxu0 %v80
    %1219 = vmatprep.subr.mxu0 %v85
    %1220 = vmatpush1.msra.mxu0 %v84
    %1221 = vmatprep.subr.mxu0 %v89
    %1222 = vmatpush1.msra.mxu0 %v88
    %1223 = vmatprep.subr.mxu0 %v93
    %1224 = vmatpush1.msra.mxu0 %v92
    %1225 = vmatprep.subr.mxu0 %v97
    %1226 = vmatpush1.msra.mxu0 %v96
    %1227 = vmatprep.subr.mxu0 %v101
    %1228 = vmatpush1.msra.mxu0 %v100
    %1229 = vmatprep.subr.mxu0 %v105
    %1230 = vmatpush1.msra.mxu0 %v104
    %1231 = vmatprep.subr.mxu0 %v109
    %1232 = vmatpush1.msra.mxu0 %v108
    %1233 = vmatprep.subr.mxu0 0.0
    %1234 = vmatpush1.msra.mxu0 0.0
    %1235 = vmatprep.subr.mxu0 0.0
    %1236 = vmatpush1.msra.mxu0 0.0
    %1237 = vmatprep.subr.mxu0 0.0
    %1238 = vmatpush1.msra.mxu0 0.0
    %1239 = vmatprep.subr.mxu0 0.0
    %1240 = vmatpush1.msra.mxu0 0.0
    %1241 = vmatprep.subr.mxu0 0.0
    %1242 = vmatpush1.msra.mxu0 0.0
    %1243 = vmatprep.subr.mxu0 0.0
    %1244 = vmatpush1.msra.mxu0 0.0
    %1245 = vmatprep.subr.mxu0 0.0
    %1246 = vmatpush1.msra.mxu0 0.0
    %1247 = vmatprep.subr.mxu0 0.0
    %1248 = vmatpush1.msra.mxu0 0.0
    %1249 = vmatprep.subr.mxu0 0.0
    %1250 = vmatpush1.msra.mxu0 0.0
    %1251 = vmatprep.subr.mxu0 0.0
    %1252 = vmatpush1.msra.mxu0 0.0
    %1253 = vmatprep.subr.mxu0 0.0
    %1254 = vmatpush1.msra.mxu0 0.0
    %1255 = vmatprep.subr.mxu0 0.0
    %1256 = vmatpush1.msra.mxu0 0.0
    %1257 = vmatprep.subr.mxu0 0.0
    %1258 = vmatpush1.msra.mxu0 0.0
    %1259 = vmatprep.subr.mxu0 0.0
    %1260 = vmatpush1.msra.mxu0 0.0
    %1261 = vmatprep.subr.mxu0 0.0
    %1262 = vmatpush1.msra.mxu0 0.0
    %1263 = vmatprep.subr.mxu0 0.0
    %1264 = vmatpush1.msra.mxu0 0.0
    %1265 = vmatprep.mubr.f32.mxu0 0.0
    %1266 = vmatmul.mubr.f32.gmra.mrb[0].mxu0 %v1124
    %v1267 = vpop.f32.mrb[0].mxu0
    %v1268 = vadd.f32 0.0, %v1267
    %v1269 = vpop.f32.mrb[0].mxu0
    %v1270 = vadd.f32 0.0, %v1269
    %1271 = vdwg.mxu0
    %v1272 = vadd.f32 %v1126, %v1197
    %v1273 = vadd.f32 %v1127, %v1199
    %v1274 = vadd.f32 %v1128, %v1268
    %v1275 = vadd.f32 %v1129, %v1270
    %v1276 = vmul.f32 %v1272, 0.5
    %v1277 = vmul.f32 %v1273, 0.5
    %v1278 = vmul.f32 %v1274, 0.5
    %v1279 = vtanh.pop %v1276
    %v1280 = vtanh.pop %v1277
    %v1281 = vtanh.pop %v1278
    %v1282 = vmul.f32 %v1279, 0.5
    %v1283 = vmul.f32 %v1280, 0.5
    %v1284 = vmul.f32 %v1281, 0.5
    %v1285 = vadd.f32 %v1282, 0.5
    %v1286 = vadd.f32 %v1283, 0.5
    %v1287 = vadd.f32 %v1284, 0.5
    %v1288 = vtanh.pop %v1275
    %v1289 = vmul.f32 %v1286, %v1122
    %v1290 = vmul.f32 %v1285, %v1288
    %v1291 = vadd.f32 %v1289, %v1290
    %v1292 = vtanh.pop %v1291
    %v1293 = vmul.f32 %v1287, %v1292
    %s1294 = scalar_lea.vmem [#allocation4], 224
    %v1295 = vld [vmem:[%s1294] sm:$0xff]
    %v1296 = vld [vmem:[%s1294 + $0x8] sm:$0xff]
    %v1297 = vld [vmem:[%s1294 + $0x10] sm:$0xff]
    %v1298 = vld [vmem:[%s1294 + $0x18] sm:$0xff]
    %1299 = vmatprep.subr.mxu0 %v47
    %1300 = vmatpush1.msra.mxu0 %v46
    %1301 = vmatprep.subr.mxu0 %v51
    %1302 = vmatpush1.msra.mxu0 %v50
    %1303 = vmatprep.subr.mxu0 %v55
    %1304 = vmatpush1.msra.mxu0 %v54
    %1305 = vmatprep.subr.mxu0 %v59
    %1306 = vmatpush1.msra.mxu0 %v58
    %1307 = vmatprep.subr.mxu0 %v63
    %1308 = vmatpush1.msra.mxu0 %v62
    %1309 = vmatprep.subr.mxu0 %v67
    %1310 = vmatpush1.msra.mxu0 %v66
    %1311 = vmatprep.subr.mxu0 %v71
    %1312 = vmatpush1.msra.mxu0 %v70
    %1313 = vmatprep.subr.mxu0 %v75
    %1314 = vmatpush1.msra.mxu0 %v74
    %1315 = vmatprep.subr.mxu0 %v79
    %1316 = vmatpush1.msra.mxu0 %v78
    %1317 = vmatprep.subr.mxu0 %v83
    %1318 = vmatpush1.msra.mxu0 %v82
    %1319 = vmatprep.subr.mxu0 %v87
    %1320 = vmatpush1.msra.mxu0 %v86
    %1321 = vmatprep.subr.mxu0 %v91
    %1322 = vmatpush1.msra.mxu0 %v90
    %1323 = vmatprep.subr.mxu0 %v95
    %1324 = vmatpush1.msra.mxu0 %v94
    %1325 = vmatprep.subr.mxu0 %v99
    %1326 = vmatpush1.msra.mxu0 %v98
    %1327 = vmatprep.subr.mxu0 %v103
    %1328 = vmatpush1.msra.mxu0 %v102
    %1329 = vmatprep.subr.mxu0 %v107
    %1330 = vmatpush1.msra.mxu0 %v106
    %1331 = vmatprep.subr.mxu0 0.0
    %1332 = vmatpush1.msra.mxu0 0.0
    %1333 = vmatprep.subr.mxu0 0.0
    %1334 = vmatpush1.msra.mxu0 0.0
    %1335 = vmatprep.subr.mxu0 0.0
    %1336 = vmatpush1.msra.mxu0 0.0
    %1337 = vmatprep.subr.mxu0 0.0
    %1338 = vmatpush1.msra.mxu0 0.0
    %1339 = vmatprep.subr.mxu0 0.0
    %1340 = vmatpush1.msra.mxu0 0.0
    %1341 = vmatprep.subr.mxu0 0.0
    %1342 = vmatpush1.msra.mxu0 0.0
    %1343 = vmatprep.subr.mxu0 0.0
    %1344 = vmatpush1.msra.mxu0 0.0
    %1345 = vmatprep.subr.mxu0 0.0
    %1346 = vmatpush1.msra.mxu0 0.0
    %1347 = vmatprep.subr.mxu0 0.0
    %1348 = vmatpush1.msra.mxu0 0.0
    %1349 = vmatprep.subr.mxu0 0.0
    %1350 = vmatpush1.msra.mxu0 0.0
    %1351 = vmatprep.subr.mxu0 0.0
    %1352 = vmatpush1.msra.mxu0 0.0
    %1353 = vmatprep.subr.mxu0 0.0
    %1354 = vmatpush1.msra.mxu0 0.0
    %1355 = vmatprep.subr.mxu0 0.0
    %1356 = vmatpush1.msra.mxu0 0.0
    %1357 = vmatprep.subr.mxu0 0.0
    %1358 = vmatpush1.msra.mxu0 0.0
    %1359 = vmatprep.subr.mxu0 0.0
    %1360 = vmatpush1.msra.mxu0 0.0
    %1361 = vmatprep.subr.mxu0 0.0
    %1362 = vmatpush1.msra.mxu0 0.0
    %1363 = vmatprep.mubr.f32.mxu0 0.0
    %1364 = vmatmul.mubr.f32.gmra.mrb[0].mxu0 %v1293
    %v1365 = vpop.f32.mrb[0].mxu0
    %v1366 = vadd.f32 0.0, %v1365
    %v1367 = vpop.f32.mrb[0].mxu0
    %v1368 = vadd.f32 0.0, %v1367
    %1369 = vdwg.mxu0
    %1370 = vmatprep.subr.mxu0 %v49
    %1371 = vmatpush1.msra.mxu0 %v48
    %1372 = vmatprep.subr.mxu0 %v53
    %1373 = vmatpush1.msra.mxu0 %v52
    %1374 = vmatprep.subr.mxu0 %v57
    %1375 = vmatpush1.msra.mxu0 %v56
    %1376 = vmatprep.subr.mxu0 %v61
    %1377 = vmatpush1.msra.mxu0 %v60
    %1378 = vmatprep.subr.mxu0 %v65
    %1379 = vmatpush1.msra.mxu0 %v64
    %1380 = vmatprep.subr.mxu0 %v69
    %1381 = vmatpush1.msra.mxu0 %v68
    %1382 = vmatprep.subr.mxu0 %v73
    %1383 = vmatpush1.msra.mxu0 %v72
    %1384 = vmatprep.subr.mxu0 %v77
    %1385 = vmatpush1.msra.mxu0 %v76
    %1386 = vmatprep.subr.mxu0 %v81
    %1387 = vmatpush1.msra.mxu0 %v80
    %1388 = vmatprep.subr.mxu0 %v85
    %1389 = vmatpush1.msra.mxu0 %v84
    %1390 = vmatprep.subr.mxu0 %v89
    %1391 = vmatpush1.msra.mxu0 %v88
    %1392 = vmatprep.subr.mxu0 %v93
    %1393 = vmatpush1.msra.mxu0 %v92
    %1394 = vmatprep.subr.mxu0 %v97
    %1395 = vmatpush1.msra.mxu0 %v96
    %1396 = vmatprep.subr.mxu0 %v101
    %1397 = vmatpush1.msra.mxu0 %v100
    %1398 = vmatprep.subr.mxu0 %v105
    %1399 = vmatpush1.msra.mxu0 %v104
    %1400 = vmatprep.subr.mxu0 %v109
    %1401 = vmatpush1.msra.mxu0 %v108
    %1402 = vmatprep.subr.mxu0 0.0
    %1403 = vmatpush1.msra.mxu0 0.0
    %1404 = vmatprep.subr.mxu0 0.0
    %1405 = vmatpush1.msra.mxu0 0.0
    %1406 = vmatprep.subr.mxu0 0.0
    %1407 = vmatpush1.msra.mxu0 0.0
    %1408 = vmatprep.subr.mxu0 0.0
    %1409 = vmatpush1.msra.mxu0 0.0
    %1410 = vmatprep.subr.mxu0 0.0
    %1411 = vmatpush1.msra.mxu0 0.0
    %1412 = vmatprep.subr.mxu0 0.0
    %1413 = vmatpush1.msra.mxu0 0.0
    %1414 = vmatprep.subr.mxu0 0.0
    %1415 = vmatpush1.msra.mxu0 0.0
    %1416 = vmatprep.subr.mxu0 0.0
    %1417 = vmatpush1.msra.mxu0 0.0
    %1418 = vmatprep.subr.mxu0 0.0
    %1419 = vmatpush1.msra.mxu0 0.0
    %1420 = vmatprep.subr.mxu0 0.0
    %1421 = vmatpush1.msra.mxu0 0.0
    %1422 = vmatprep.subr.mxu0 0.0
    %1423 = vmatpush1.msra.mxu0 0.0
    %1424 = vmatprep.subr.mxu0 0.0
    %1425 = vmatpush1.msra.mxu0 0.0
    %1426 = vmatprep.subr.mxu0 0.0
    %1427 = vmatpush1.msra.mxu0 0.0
    %1428 = vmatprep.subr.mxu0 0.0
    %1429 = vmatpush1.msra.mxu0 0.0
    %1430 = vmatprep.subr.mxu0 0.0
    %1431 = vmatpush1.msra.mxu0 0.0
    %1432 = vmatprep.subr.mxu0 0.0
    %1433 = vmatpush1.msra.mxu0 0.0
    %1434 = vmatprep.mubr.f32.mxu0 0.0
    %1435 = vmatmul.mubr.f32.gmra.mrb[0].mxu0 %v1293
    %v1436 = vpop.f32.mrb[0].mxu0
    %v1437 = vadd.f32 0.0, %v1436
    %v1438 = vpop.f32.mrb[0].mxu0
    %v1439 = vadd.f32 0.0, %v1438
    %1440 = vdwg.mxu0
    %v1441 = vadd.f32 %v1295, %v1366
    %v1442 = vadd.f32 %v1296, %v1368
    %v1443 = vadd.f32 %v1297, %v1437
    %v1444 = vadd.f32 %v1298, %v1439
    %v1445 = vmul.f32 %v1441, 0.5
    %v1446 = vmul.f32 %v1442, 0.5
    %v1447 = vmul.f32 %v1443, 0.5
    %v1448 = vtanh.pop %v1445
    %v1449 = vtanh.pop %v1446
    %v1450 = vtanh.pop %v1447
    %v1451 = vmul.f32 %v1448, 0.5
    %v1452 = vmul.f32 %v1449, 0.5
    %v1453 = vmul.f32 %v1450, 0.5
    %v1454 = vadd.f32 %v1451, 0.5
    %v1455 = vadd.f32 %v1452, 0.5
    %v1456 = vadd.f32 %v1453, 0.5
    %v1457 = vtanh.pop %v1444
    %v1458 = vmul.f32 %v1455, %v1291
    %v1459 = vmul.f32 %v1454, %v1457
    %v1460 = vadd.f32 %v1458, %v1459
    %v1461 = vtanh.pop %v1460
    %v1462 = vmul.f32 %v1456, %v1461
    %1463 = vst [vmem:[#allocation2] sm:$0xff] %v1462
    %1464 = vst [vmem:[#allocation3] sm:$0xff] %v1460
    // Predicated region
    $region22: #{tpu_custom_call.1} parent=1 // pred_check
      %p1465 = pneg %p40
    $region23: #{tpu_custom_call.1} parent=1 // pred_check_branch
      %1467 = sbr.rel (%p1465) target = $region25
    $region24: #{tpu_custom_call.1} parent=1 // pred_region
      %1468 = vst [vmem:[#allocation9] sm:$0xff] %v1462
    $region25: #{tpu_custom_call.1} parent=1 // pred_fallthru
      _
    // Predicated region
    $region26: #{tpu_custom_call.1} parent=1 // pred_check
      _
    $region27: #{tpu_custom_call.1} parent=1 // pred_check_branch
      %1470 = sbr.rel (0) target = $region29
    $region28: #{tpu_custom_call.1} parent=1 // pred_region
      %s1472 = ssub.s32 128, 128
      %1473 = vsyncadd [#allocation6], %s1472
      %s1475 = sshll.u32 [#allocation9], 4
      %s1476 = int_to_ptr.vmem [resolvable:$true] %s1475
      %1478 = dma.vmem_to_hbm [thread:$0]  %s1476, 128, %s2, [#allocation6]
    $region29: #{tpu_custom_call.1} parent=1 // pred_fallthru
      _
    // Predicated region
    $region30: #{tpu_custom_call.1} parent=1 // pred_check
      _
    $region31: #{tpu_custom_call.1} parent=1 // pred_check_branch
      %1480 = sbr.rel (0) target = $region33
    $region32: #{tpu_custom_call.1} parent=1 // pred_region
      %1481 = dma.done [#allocation6], 128
    $region33: #{tpu_custom_call.1} parent=1 // pred_fallthru
      _
    %1482 = vsyncpa [#allocation5], 1
    %1483 = vsyncpa [#allocation8], 1
    %1484 = vsyncpa [#allocation6], 1

</llo_original>
